<compile_context>
chip_gen: v7x
topology: tpu7x:2x2x1
jax: 0.10.0
libtpu: 0.0.40
codegen_flags: <defaults>
</compile_context>

<pallas_src>
import functools

import numpy as np

import jax
import jax.numpy as jnp
from jax import lax
from jax.experimental import pallas as pl
from jax.experimental.pallas import tpu as pltpu

_HALF_PI = float(np.float32(np.pi / 2.0))


def _freq_bands(max_freq_log2, num_freqs):
    """Matches torch: 2.0 ** torch.linspace(0, max_freq_log2, num_freqs) in f32."""
    return (2.0 ** np.linspace(0.0, float(max_freq_log2), int(num_freqs),
                               dtype=np.float32)).astype(np.float32)


def _round_up(x, m):
    return ((x + m - 1) // m) * m


def _scale_phase_columns(input_dim, freq_bands, rows_padded):
    """Per-output-row (rows_padded, 1) f32 columns: angle = scale*x + phase.

    Row order matches torch.cat([x, sin(f0 x), cos(f0 x), sin(f1 x), ...]).
    Identity rows and pad rows keep scale = phase = 0 (they are either replaced
    by the identity select or sliced away before the store).
    """
    d = input_dim
    scale = np.zeros((rows_padded, 1), np.float32)
    phase = np.zeros((rows_padded, 1), np.float32)
    for k, f in enumerate(freq_bands):
        s0 = d * (1 + 2 * k)          # sin(f * x) rows
        c0 = s0 + d                   # cos(f * x) rows, via sin(f*x + pi/2)
        scale[s0:s0 + d, 0] = f
        scale[c0:c0 + d, 0] = f
        phase[c0:c0 + d, 0] = _HALF_PI
    return scale, phase


def _pe_kernel(x_ref, scale_ref, phase_ref, o_ref, *, input_dim, output_dim,
               transpose_out, sin_dtype):
    """Fused positional encoding on one lane-dense tile.

    x_ref:     (input_dim, TILE)  f32, lane axis = points (feature-major)
    scale_ref: (rows_padded, 1)   f32
    phase_ref: (rows_padded, 1)   f32
    o_ref:     (TILE, output_dim) if transpose_out else (output_dim, TILE)
    """
    d = input_dim
    rp = scale_ref.shape[0]                       # output rows padded to mult of 8
    x = x_ref[...]                                # (d, TILE)

    # Dense operand: row r carries x[r % d] (sublane tiling; all later ops are
    # full-occupancy vreg ops instead of 3-of-8-sublane partials).
    reps = (rp + d - 1) // d
    x_rep = jnp.concatenate([x] * reps, axis=0)[:rp, :]          # (rp, TILE)

    angle = x_rep * scale_ref[...] + phase_ref[...]              # (rp, TILE)
    if sin_dtype is not None:
        # bf16 EUP path (v6e / v7x); keep f32 on v5e (no bf16 EUP/VPU).
        y = jnp.sin(angle.astype(sin_dtype)).astype(jnp.float32)
    else:
        y = jnp.sin(angle)

    # Identity rows (r < d) pass x through unchanged; pad rows are sliced away.
    row = lax.broadcasted_iota(jnp.int32, (rp, 1), 0)
    enc = jnp.where(row < d, x_rep, y)                           # (rp, TILE)

    if transpose_out:
        # In-kernel (rows_padded, TILE) -> (TILE, rows_padded) transpose so the
        # HBM output is already the natural [..., output_dim] layout; avoids an
        # XLA transpose that would re-stream the whole output through HBM.
        enc_t = jnp.transpose(enc, (1, 0))                       # (TILE, rp)
        o_ref[...] = enc_t[:, :output_dim].astype(o_ref.dtype)
    else:
        o_ref[...] = enc[:output_dim, :].astype(o_ref.dtype)


def positional_encoding(x, *, max_freq_log2=10, num_freqs=10,
                        tile_n=8192, out_dtype=None, sin_dtype=None,
                        feature_major_out=False,
                        vmem_limit_bytes=48 * 1024 * 1024):
    """JAX/Pallas equivalent of PositionalEncoding.forward.

    x: [..., input_dim] float tensor.
    Returns [..., input_dim * (1 + 2*num_freqs)] (torch module contract), or the
    feature-major [output_dim, N] slab if feature_major_out=True (fast path for
    consumers that accept it — no layout plumbing at all).

    Tuning:
      * sin_dtype=jnp.bfloat16 on v6e/v7x (bf16 EUP); leave None (f32) on v5e.
      * out_dtype=jnp.bfloat16 halves the dominant HBM write traffic (opt-in
        numerical change vs the f32 reference).
      * tile_n=8192 default; 16384 with vmem_limit_bytes≈80 MiB is fine on v6e,
        keep <=16384 / <=56 MiB on v7x (64 MiB physical VMEM).
    """
    input_dim = x.shape[-1]
    output_dim = input_dim * (1 + 2 * num_freqs)
    out_dtype = x.dtype if out_dtype is None else out_dtype
    freqs = _freq_bands(max_freq_log2, num_freqs)

    lead_shape = x.shape[:-1]
    n = int(np.prod(lead_shape)) if lead_shape else 1

    rows_padded = _round_up(output_dim, 8)
    scale_np, phase_np = _scale_phase_columns(input_dim, freqs, rows_padded)
    scale = jnp.asarray(scale_np)
    phase = jnp.asarray(phase_np)

    # Feature-major input so the large point axis lands on the 128-lane axis.
    # This [n, D] -> [D, n] transpose is ~24 B/pt, small next to the ~252 B/pt
    # output write (callers that already hold feature-major data could skip it).
    x_t = x.reshape(n, input_dim).astype(jnp.float32).T          # (input_dim, n)

    # Largest useful tile (multiple of 128 lanes), capped so grid >= 2 to keep
    # the "parallel" axis splittable across the two v7x TensorCores.  Pallas
    # clamps the ragged last block (OOB reads don't-care, OOB writes dropped).
    tile = max(128, min(int(tile_n), _round_up(max(1, (n + 1) // 2), 128)))
    grid = pl.cdiv(n, tile)

    kernel = functools.partial(
        _pe_kernel, input_dim=input_dim, output_dim=output_dim,
        transpose_out=not feature_major_out, sin_dtype=sin_dtype)

    in_specs = [
        pl.BlockSpec((input_dim, tile), lambda i: (0, i)),
        pl.BlockSpec((rows_padded, 1), lambda i: (0, 0)),   # constant block -> no re-DMA
        pl.BlockSpec((rows_padded, 1), lambda i: (0, 0)),
    ]
    if feature_major_out:
        out_shape = jax.ShapeDtypeStruct((output_dim, n), out_dtype)
        out_spec = pl.BlockSpec((output_dim, tile), lambda i: (0, i))
    else:
        out_shape = jax.ShapeDtypeStruct((n, output_dim), out_dtype)
        out_spec = pl.BlockSpec((tile, output_dim), lambda i: (i, 0))

    out = pl.pallas_call(
        kernel,
        out_shape=out_shape,
        grid_spec=pltpu.PrefetchScalarGridSpec(
            num_scalar_prefetch=0,
            grid=(grid,),
            in_specs=in_specs,
            out_specs=out_spec,
        ),
        compiler_params=pltpu.CompilerParams(
            dimension_semantics=("parallel",),
            vmem_limit_bytes=vmem_limit_bytes,
        ),
    )(x_t, scale, phase)

    if feature_major_out:
        return out                                  # (output_dim, n)
    return out.reshape(*lead_shape, output_dim)     # natural layout, no transpose


def _reference(x, *, max_freq_log2=10, num_freqs=10):
    parts = [x]
    for f in _freq_bands(max_freq_log2, num_freqs):
        f = float(f)
        parts.append(jnp.sin(f * x))
        parts.append(jnp.cos(f * x))
    return jnp.concatenate(parts, axis=-1)


if __name__ == "__main__":
    key = jax.random.PRNGKey(0)
    # Typical NeRF usage: rays x samples with normalized 3-D coordinates.
    batch, n_samples, input_dim = 2, 256, 3
    x = jax.random.uniform(key, (batch, n_samples, input_dim),
                           dtype=jnp.float32, minval=-1.0, maxval=1.0)

    out = positional_encoding(x, max_freq_log2=10, num_freqs=10)
    out = jax.block_until_ready(out)

    expected_dim = input_dim * (1 + 2 * 10)
    assert out.shape == (batch, n_samples, expected_dim), out.shape

    ref = _reference(x, max_freq_log2=10, num_freqs=10)
    # Identity columns are a pure passthrough of x.
    assert jnp.allclose(out[..., :input_dim], x, atol=1e-6, rtol=0.0)
    # cos rows are computed as sin(f*x + pi/2): the extra argument rounding
    # bounds the deviation from cos(f*x) by ~|f*x| * 2^-24 (~6e-5 at f=1024,
    # |x|<=1); 5e-4 leaves margin for range-reduction differences at large args.
    max_err = float(jnp.max(jnp.abs(out - ref)))
    assert jnp.allclose(out, ref, atol=5e-4, rtol=0.0), max_err

    # Feature-major fast path (no transposes anywhere).
    out_fm = positional_encoding(x, max_freq_log2=10, num_freqs=10,
                                 feature_major_out=True)
    out_fm = jax.block_until_ready(out_fm)
    assert out_fm.shape == (expected_dim, batch * n_samples), out_fm.shape
    out_fm_nat = out_fm.T.reshape(batch, n_samples, expected_dim)
    assert jnp.allclose(out_fm_nat, ref, atol=5e-4, rtol=0.0)

    print("KERNEL_OK")
</pallas_src>

<mosaic_0001>
module attributes {stable_mosaic.version = 11 : i64} {
  func.func @_pe_kernel(%arg0: i32, %arg1: memref<3x256xf32, #tpu.memory_space<vmem>>, %arg2: memref<64x1xf32, #tpu.memory_space<vmem>>, %arg3: memref<64x1xf32, #tpu.memory_space<vmem>>, %arg4: memref<256x63xf32, #tpu.memory_space<vmem>>) attributes {dimension_semantics = [#tpu.dimension_semantics<parallel>], iteration_bounds = array<i64: 2>, scalar_prefetch = 0 : i64, scratch_operands = 0 : i64, tpu.core_type = #tpu.core_type<tc>, window_params = [{transform_indices = @transform_0, window_bounds = array<i64: 3, 256>}, {pipeline_mode = #tpu.pipeline_mode<synchronous>, transform_indices = @transform_1, window_bounds = array<i64: 64, 1>}, {pipeline_mode = #tpu.pipeline_mode<synchronous>, transform_indices = @transform_2, window_bounds = array<i64: 64, 1>}, {transform_indices = @transform_3, window_bounds = array<i64: 256, 63>}]} {
    %c0 = arith.constant 0 : index
    %c0_0 = arith.constant 0 : index
    %0 = vector.load %arg1[%c0, %c0_0] : memref<3x256xf32, #tpu.memory_space<vmem>>, vector<3x256xf32>
    %1 = tpu.concatenate %0, %0, %0, %0, %0, %0, %0, %0, %0, %0, %0, %0, %0, %0, %0, %0 in 0 : vector<3x256xf32>, vector<3x256xf32>, vector<3x256xf32>, vector<3x256xf32>, vector<3x256xf32>, vector<3x256xf32>, vector<3x256xf32>, vector<3x256xf32>, vector<3x256xf32>, vector<3x256xf32>, vector<3x256xf32>, vector<3x256xf32>, vector<3x256xf32>, vector<3x256xf32>, vector<3x256xf32>, vector<3x256xf32> -> vector<48x256xf32>
    %2 = tpu.concatenate %0, %0, %0, %0, %0, %0 in 0 : vector<3x256xf32>, vector<3x256xf32>, vector<3x256xf32>, vector<3x256xf32>, vector<3x256xf32>, vector<3x256xf32> -> vector<18x256xf32>
    %3 = tpu.concatenate %1, %2 in 0 : vector<48x256xf32>, vector<18x256xf32> -> vector<66x256xf32>
    %4 = vector.extract_strided_slice %3 {offsets = [0, 0], sizes = [64, 256], strides = [1, 1]} : vector<66x256xf32> to vector<64x256xf32>
    %c0_1 = arith.constant 0 : index
    %c0_2 = arith.constant 0 : index
    %5 = vector.load %arg2[%c0_1, %c0_2] : memref<64x1xf32, #tpu.memory_space<vmem>>, vector<64x1xf32>
    %6 = vector.broadcast %5 : vector<64x1xf32> to vector<64x256xf32>
    %7 = arith.mulf %4, %6 : vector<64x256xf32>
    %c0_3 = arith.constant 0 : index
    %c0_4 = arith.constant 0 : index
    %8 = vector.load %arg3[%c0_3, %c0_4] : memref<64x1xf32, #tpu.memory_space<vmem>>, vector<64x1xf32>
    %9 = vector.broadcast %8 : vector<64x1xf32> to vector<64x256xf32>
    %10 = arith.addf %7, %9 : vector<64x256xf32>
    %11 = math.sin %10 : vector<64x256xf32>
    %12 = tpu.iota {dimensions = array<i32: 0>} : vector<64x1xi32>
    %c3_i32 = arith.constant 3 : i32
    %13 = vector.broadcast %c3_i32 : i32 to vector<64x1xi32>
    %14 = arith.cmpi slt, %12, %13 : vector<64x1xi32>
    %15 = vector.shape_cast %14 : vector<64x1xi1> to vector<64x1xi1>
    %16 = vector.broadcast %15 : vector<64x1xi1> to vector<64x256xi1>
    %17 = arith.select %16, %4, %11 : vector<64x256xi1>, vector<64x256xf32>
    %18 = tpu.transpose %17, [1, 0] : vector<64x256xf32> -> vector<256x64xf32>
    %19 = vector.extract_strided_slice %18 {offsets = [0, 0], sizes = [256, 63], strides = [1, 1]} : vector<256x64xf32> to vector<256x63xf32>
    %c0_5 = arith.constant 0 : index
    %c0_6 = arith.constant 0 : index
    %20 = vector.load %arg4[%c0_5, %c0_6] : memref<256x63xf32, #tpu.memory_space<vmem>>, vector<256x63xf32>
    tpu.vector_store %arg4[%c0_5, %c0_6], %19 {strides = array<i32>} : memref<256x63xf32, #tpu.memory_space<vmem>>, vector<256x63xf32>,
    return
  }
  func.func @transform_0(%arg0: i32) -> (i32, i32) {
    %c0_i32 = arith.constant 0 : i32
    %c0_i32_0 = arith.constant 0 : i32
    return %c0_i32, %arg0 : i32, i32
  }
  func.func @transform_1(%arg0: i32) -> (i32, i32) {
    %c0_i32 = arith.constant 0 : i32
    %c0_i32_0 = arith.constant 0 : i32
    %c0_i32_1 = arith.constant 0 : i32
    return %c0_i32, %c0_i32_0 : i32, i32
  }
  func.func @transform_2(%arg0: i32) -> (i32, i32) {
    %c0_i32 = arith.constant 0 : i32
    %c0_i32_0 = arith.constant 0 : i32
    %c0_i32_1 = arith.constant 0 : i32
    return %c0_i32, %c0_i32_0 : i32, i32
  }
  func.func @transform_3(%arg0: i32) -> (i32, i32) {
    %c0_i32 = arith.constant 0 : i32
    %c0_i32_0 = arith.constant 0 : i32
    return %arg0, %c0_i32 : i32, i32
  }
}

</mosaic_0001>

<llo_original>
// kernel: tpu_custom_call.1
$region0: #{tpu_custom_call.1}
  #allocation0 [shape = 'u32[]', space=smem, size = 0x4, offset = 0x4, fixed_abs, tag = 'smem constant byte address 0x4 - core index']
  #allocation1 [shape = 'u32[144,128]{1,0:T(1,128)}', space=vmem, size = 0x12000, scoped, tag = 'internal scratch']
  %s0 = inlined_call_operand.vmem [shape: f32[3,512], index: 0, kind: input, shape index: {}]
  %s1 = inlined_call_operand.vmem [shape: f32[64,1], index: 1, kind: input, shape index: {}]
  %s2 = inlined_call_operand.vmem [shape: f32[64,1], index: 2, kind: input, shape index: {}]
  %s3 = inlined_call_operand.vmem [shape: f32[512,63], index: 3, kind: output, shape index: {}]
  %s4 = sld [smem:[#allocation0]]
  $region45: #{tpu_custom_call.1} parent=0
    _
  %s6 = ssub.s32 1, %s4
  %s7 = scalar_select 0, %s6, %s4
  loop: start=0, step=1, limit=4
  $region2: #{tpu_custom_call.1} parent=0 // loop_pre_header
    _
  $region3: #{tpu_custom_call.1} parent=0 // loop_header
    %s9 = sphi 0, %s13
    %p10 = scmp.ge.s32.totalorder %s9, 4
    %s19 = sphi 0, %s21
    %s22 = sphi 0, %s19
    %s23 = sphi 0, %s22
    %s39 = sphi 0, %s23
    %s43 = sphi 0, %s43
    %s45 = sphi 0, %s43
    %s46 = sphi 0, %s45
    %s60 = sphi 0, %s46
    %s64 = sphi 0, %s64
    %s66 = sphi 0, %s64
    %s67 = sphi 0, %s66
    %s81 = sphi 0, %s67
    %s87 = sphi 0, %s89
    %s90 = sphi 0, %s87
    %s91 = sphi 0, %s90
    %s107 = sphi 0, %s91
  $region4: #{tpu_custom_call.1} parent=0 // loop_header_branch
    %12 = sbr.rel (%p10) target = $region8
  $region5: #{tpu_custom_call.1} parent=0 // loop_body
    %s14 = ssub.s32 %s9, 1
    %s15 = ssub.s32 %s9, 2
    %s16 = sadd.s32 %s9, 1
    %s17 = ssub.s32 %s9, %s16
    %p18 = scmp.eq.s32.totalorder %s17, 0
    %s20 = sadd.s32 %s19, 1
    %s21 = scalar_select %p18, %s19, %s20
    %p24 = pneg %p18
    %p25 = scmp.eq.s32.totalorder %s9, 1
    %p26 = por %p24, %p25
    %p27 = scmp.ne.s32.totalorder %s19, %s22
    %p28 = scmp.eq.s32.totalorder %s9, 0
    %p29 = por %p27, %p28
    %p30 = scmp.ne.s32.totalorder %s19, %s22
    %p31 = scmp.eq.s32.totalorder %s14, 1
    %p32 = por %p30, %p31
    %p33 = scmp.ne.s32.totalorder %s22, %s23
    %p34 = scmp.eq.s32.totalorder %s14, 0
    %p35 = por %p33, %p34
    %p36 = scmp.ne.s32.totalorder %s22, %s23
    %p37 = scmp.eq.s32.totalorder %s15, 1
    %p38 = por %p36, %p37
    %p40 = scmp.ne.s32.totalorder %s23, %s39
    %p41 = scmp.eq.s32.totalorder %s15, 0
    %p42 = por %p40, %p41
    %s44 = sadd.s32 %s43, 1
    %p47 = scmp.eq.s32.totalorder %s9, 1
    %p48 = scmp.ne.s32.totalorder %s43, %s45
    %p49 = scmp.eq.s32.totalorder %s9, 0
    %p50 = por %p48, %p49
    %p51 = scmp.ne.s32.totalorder %s43, %s45
    %p52 = scmp.eq.s32.totalorder %s14, 1
    %p53 = por %p51, %p52
    %p54 = scmp.ne.s32.totalorder %s45, %s46
    %p55 = scmp.eq.s32.totalorder %s14, 0
    %p56 = por %p54, %p55
    %p57 = scmp.ne.s32.totalorder %s45, %s46
    %p58 = scmp.eq.s32.totalorder %s15, 1
    %p59 = por %p57, %p58
    %p61 = scmp.ne.s32.totalorder %s46, %s60
    %p62 = scmp.eq.s32.totalorder %s15, 0
    %p63 = por %p61, %p62
    %s65 = sadd.s32 %s64, 1
    %p68 = scmp.eq.s32.totalorder %s9, 1
    %p69 = scmp.ne.s32.totalorder %s64, %s66
    %p70 = scmp.eq.s32.totalorder %s9, 0
    %p71 = por %p69, %p70
    %p72 = scmp.ne.s32.totalorder %s64, %s66
    %p73 = scmp.eq.s32.totalorder %s14, 1
    %p74 = por %p72, %p73
    %p75 = scmp.ne.s32.totalorder %s66, %s67
    %p76 = scmp.eq.s32.totalorder %s14, 0
    %p77 = por %p75, %p76
    %p78 = scmp.ne.s32.totalorder %s66, %s67
    %p79 = scmp.eq.s32.totalorder %s15, 1
    %p80 = por %p78, %p79
    %p82 = scmp.ne.s32.totalorder %s67, %s81
    %p83 = scmp.eq.s32.totalorder %s15, 0
    %p84 = por %p82, %p83
    %s85 = ssub.s32 %s9, %s16
    %p86 = scmp.eq.s32.totalorder %s85, 0
    %s88 = sadd.s32 %s87, 1
    %s89 = scalar_select %p86, %s87, %s88
    %p92 = pneg %p86
    %p93 = scmp.eq.s32.totalorder %s9, 1
    %p94 = por %p92, %p93
    %p95 = scmp.ne.s32.totalorder %s87, %s90
    %p96 = scmp.eq.s32.totalorder %s9, 0
    %p97 = por %p95, %p96
    %p98 = scmp.ne.s32.totalorder %s87, %s90
    %p99 = scmp.eq.s32.totalorder %s14, 1
    %p100 = por %p98, %p99
    %p101 = scmp.ne.s32.totalorder %s90, %s91
    %p102 = scmp.eq.s32.totalorder %s14, 0
    %p103 = por %p101, %p102
    %p104 = scmp.ne.s32.totalorder %s90, %s91
    %p105 = scmp.eq.s32.totalorder %s15, 1
    %p106 = por %p104, %p105
    %p108 = scmp.ne.s32.totalorder %s91, %s107
    %p109 = scmp.eq.s32.totalorder %s15, 0
    %p110 = por %p108, %p109
    %p111 = scmp.le.s32.totalorder 1, %s9
    %p112 = scmp.lt.s32.totalorder %s9, 3
    %p113 = pnand %p111, %p112
    %p114 = pneg %p113
    // Predicated region
    $region9: #{tpu_custom_call.1} parent=5 // pred_check
      _
    $region10: #{tpu_custom_call.1} parent=5 // pred_check_branch
      %116 = sbr.rel (%p113) target = $region12
    $region11: #{tpu_custom_call.1} parent=5 // pred_region
      %s117 = ssub.s32 %s9, 1
      // Predicated region
      $region13: #{tpu_custom_call.1} parent=11 // pred_check
        %p118 = pneg %p56
      $region14: #{tpu_custom_call.1} parent=11 // pred_check_branch
        %120 = sbr.rel (%p118) target = $region16
      $region15: #{tpu_custom_call.1} parent=11 // pred_region
        _
      $region16: #{tpu_custom_call.1} parent=11 // pred_fallthru
        _
      // Predicated region
      $region17: #{tpu_custom_call.1} parent=11 // pred_check
        %p121 = pneg %p77
      $region18: #{tpu_custom_call.1} parent=11 // pred_check_branch
        %123 = sbr.rel (%p121) target = $region20
      $region19: #{tpu_custom_call.1} parent=11 // pred_region
        _
      $region20: #{tpu_custom_call.1} parent=11 // pred_fallthru
        _
    $region12: #{tpu_custom_call.1} parent=5 // pred_fallthru
      _
    %p124 = scmp.lt.s32.totalorder %s9, 2
    // Predicated region
    $region21: #{tpu_custom_call.1} parent=5 // pred_check
      %p125 = pneg %p124
    $region22: #{tpu_custom_call.1} parent=5 // pred_check_branch
      %127 = sbr.rel (%p125) target = $region24
    $region23: #{tpu_custom_call.1} parent=5 // pred_region
      // Predicated region
      $region25: #{tpu_custom_call.1} parent=23 // pred_check
        %p128 = pneg %p29
      $region26: #{tpu_custom_call.1} parent=23 // pred_check_branch
        %130 = sbr.rel (%p128) target = $region28
      $region27: #{tpu_custom_call.1} parent=23 // pred_region
        %s131 = smul.u32 2, %s9
        %p132 = scmp.lt.s32.totalorder %s131, 3
        %s133 = scalar_select %p132, %s131, 3
        %s134 = smul.addr %s133, 4
        %s135 = scalar_lea.vmem %s0, %s134
        %s136 = smul.u32 2, %s9
      $region28: #{tpu_custom_call.1} parent=23 // pred_fallthru
        _
    $region24: #{tpu_custom_call.1} parent=5 // pred_fallthru
      _
    %p137 = scmp.le.s32.totalorder 1, %s9
    %p138 = scmp.lt.s32.totalorder %s9, 3
    %p139 = pnand %p137, %p138
    %p140 = pneg %p139
    // Predicated region
    $region29: #{tpu_custom_call.1} parent=5 // pred_check
      _
    $region30: #{tpu_custom_call.1} parent=5 // pred_check_branch
      %142 = sbr.rel (%p139) target = $region32
    $region31: #{tpu_custom_call.1} parent=5 // pred_region
      %s143 = ssub.s32 %s9, 1
      %s144 = smul.u32 2, %s14
      %p145 = scmp.lt.s32.totalorder %s144, 3
      %s146 = scalar_select %p145, %s144, 3
      %s147 = smul.addr %s146, 4
      %s148 = scalar_lea.vmem %s0, %s147
      %p149 = pneg %p35
      %p150 = pneg %p32
      %p151 = pneg %p56
      %p152 = pneg %p53
      %p153 = pneg %p77
      %p154 = pneg %p74
      %p155 = pneg %p103
      %p156 = pneg %p100
      %s157 = smul.u32 32, %s14
      %p158 = scmp.lt.s32.totalorder %s157, 63
      %s159 = scalar_select %p158, %s157, 63
      %s160 = smul.addr %s159, 8
      %s161 = scalar_lea.vmem %s3, %s160
      %s162 = smul.u32 2, %s14
      %p163 = scmp.lt.s32.totalorder %s162, 3
      %s164 = scalar_select %p163, %s162, 3
      %s165 = smul.addr %s164, 4
      %s166 = scalar_lea.vmem %s0, %s165
      %s167 = smul.u32 2, %s14
      %s168 = smul.u32 32, %s14
      %p169 = scmp.lt.s32.totalorder %s168, 63
      %s170 = scalar_select %p169, %s168, 63
      %s171 = smul.addr %s170, 8
      %s172 = scalar_lea.vmem %s3, %s171
      %s173 = smul.u32 32, %s14
      %v174 = vld [vmem:[%s166] sm:$0x77]
      %v176 = vcombine.high %v174, %v174
      %v178 = vrot.slane %v174, 5
      %v179 = vrot.slane %v176, 5
      %v182 = vrot.slane %v174, 2
      %v183 = vrot.slane %v176, 2
      %v186 = vrot.slane %v174, 7
      %v187 = vrot.slane %v176, 7
      %v190 = vcombine.low %v174, %v174
      %v192 = vrot.slane %v174, 1
      %v193 = vrot.slane %v176, 1
      %v196 = vrot.slane %v174, 6
      %v197 = vrot.slane %v176, 6
      %v200 = vrot.slane %v174, 3
      %v201 = vrot.slane %v176, 3
      %vm204 = vcmask 1042432
      %v205 = vsel %vm204, %v174, %v178
      %v206 = vsel %vm204, %v176, %v179
      %vm207 = vcmask 1045504
      %v208 = vsel %vm207, %v205, %v182
      %v209 = vsel %vm207, %v206, %v183
      %vm210 = vcmask 1040384
      %v211 = vsel %vm210, %v182, %v186
      %v212 = vsel %vm210, %v183, %v187
      %vm213 = vcmask 1043456
      %v214 = vsel %vm213, %v211, %v190
      %v215 = vsel %vm213, %v212, %v174
      %vm216 = vcmask 1046528
      %v217 = vsel %vm216, %v214, %v192
      %v218 = vsel %vm216, %v215, %v193
      %vm219 = vcmask 1041408
      %v220 = vsel %vm219, %v192, %v196
      %v221 = vsel %vm219, %v193, %v197
      %vm222 = vcmask 1044480
      %v223 = vsel %vm222, %v220, %v200
      %v224 = vsel %vm222, %v221, %v201
      %v225 = vld [vmem:[%s1] sm:$0xff]
      %v226 = vld [vmem:[%s1 + $0x8] sm:$0xff]
      %v227 = vld [vmem:[%s1 + $0x10] sm:$0xff]
      %v228 = vld [vmem:[%s1 + $0x18] sm:$0xff]
      %v229 = vld [vmem:[%s1 + $0x20] sm:$0xff]
      %v230 = vld [vmem:[%s1 + $0x28] sm:$0xff]
      %v231 = vld [vmem:[%s1 + $0x30] sm:$0xff]
      %v232 = vld [vmem:[%s1 + $0x38] sm:$0xff]
      %234 = vset.pattern.permute.xlu0 0
      %235 = vperm.xlu0 %234, %v225
      %v236 = vpop.permute.xlu0 %235
      %239 = vset.pattern.permute.xlu0 0
      %240 = vperm.xlu0 %239, %v226
      %v241 = vpop.permute.xlu0 %240
      %244 = vset.pattern.permute.xlu0 0
      %245 = vperm.xlu0 %244, %v227
      %v246 = vpop.permute.xlu0 %245
      %249 = vset.pattern.permute.xlu0 0
      %250 = vperm.xlu0 %249, %v228
      %v251 = vpop.permute.xlu0 %250
      %254 = vset.pattern.permute.xlu0 0
      %255 = vperm.xlu0 %254, %v229
      %v256 = vpop.permute.xlu0 %255
      %259 = vset.pattern.permute.xlu0 0
      %260 = vperm.xlu0 %259, %v230
      %v261 = vpop.permute.xlu0 %260
      %264 = vset.pattern.permute.xlu0 0
      %265 = vperm.xlu0 %264, %v231
      %v266 = vpop.permute.xlu0 %265
      %269 = vset.pattern.permute.xlu0 0
      %270 = vperm.xlu0 %269, %v232
      %v271 = vpop.permute.xlu0 %270
      %v273 = vmul.f32 %v208, %v236
      %v274 = vmul.f32 %v209, %v236
      %v275 = vmul.f32 %v217, %v241
      %v276 = vmul.f32 %v218, %v241
      %v277 = vmul.f32 %v223, %v246
      %v278 = vmul.f32 %v224, %v246
      %v279 = vmul.f32 %v208, %v251
      %v280 = vmul.f32 %v209, %v251
      %v281 = vmul.f32 %v217, %v256
      %v282 = vmul.f32 %v218, %v256
      %v283 = vmul.f32 %v223, %v261
      %v284 = vmul.f32 %v224, %v261
      %v285 = vmul.f32 %v208, %v266
      %v286 = vmul.f32 %v209, %v266
      %v287 = vmul.f32 %v217, %v271
      %v288 = vmul.f32 %v218, %v271
      %v289 = vld [vmem:[%s2] sm:$0xff]
      %v290 = vld [vmem:[%s2 + $0x8] sm:$0xff]
      %v291 = vld [vmem:[%s2 + $0x10] sm:$0xff]
      %v292 = vld [vmem:[%s2 + $0x18] sm:$0xff]
      %v293 = vld [vmem:[%s2 + $0x20] sm:$0xff]
      %v294 = vld [vmem:[%s2 + $0x28] sm:$0xff]
      %v295 = vld [vmem:[%s2 + $0x30] sm:$0xff]
      %v296 = vld [vmem:[%s2 + $0x38] sm:$0xff]
      %298 = vset.pattern.permute.xlu0 0
      %299 = vperm.xlu0 %298, %v289
      %v300 = vpop.permute.xlu0 %299
      %303 = vset.pattern.permute.xlu0 0
      %304 = vperm.xlu0 %303, %v290
      %v305 = vpop.permute.xlu0 %304
      %308 = vset.pattern.permute.xlu0 0
      %309 = vperm.xlu0 %308, %v291
      %v310 = vpop.permute.xlu0 %309
      %313 = vset.pattern.permute.xlu0 0
      %314 = vperm.xlu0 %313, %v292
      %v315 = vpop.permute.xlu0 %314
      %318 = vset.pattern.permute.xlu0 0
      %319 = vperm.xlu0 %318, %v293
      %v320 = vpop.permute.xlu0 %319
      %323 = vset.pattern.permute.xlu0 0
      %324 = vperm.xlu0 %323, %v294
      %v325 = vpop.permute.xlu0 %324
      %328 = vset.pattern.permute.xlu0 0
      %329 = vperm.xlu0 %328, %v295
      %v330 = vpop.permute.xlu0 %329
      %333 = vset.pattern.permute.xlu0 0
      %334 = vperm.xlu0 %333, %v296
      %v335 = vpop.permute.xlu0 %334
      %v337 = vadd.f32 %v273, %v300
      %v338 = vadd.f32 %v274, %v300
      %v339 = vadd.f32 %v275, %v305
      %v340 = vadd.f32 %v276, %v305
      %v341 = vadd.f32 %v277, %v310
      %v342 = vadd.f32 %v278, %v310
      %v343 = vadd.f32 %v279, %v315
      %v344 = vadd.f32 %v280, %v315
      %v345 = vadd.f32 %v281, %v320
      %v346 = vadd.f32 %v282, %v320
      %v347 = vadd.f32 %v283, %v325
      %v348 = vadd.f32 %v284, %v325
      %v349 = vadd.f32 %v285, %v330
      %v350 = vadd.f32 %v286, %v330
      %v351 = vadd.f32 %v287, %v335
      %v352 = vadd.f32 %v288, %v335
      %v353 = vand.u32 2147483647, %v337
      %vm354 = vcmp.le.f32.partialorder %v353, 0.7853982
      %vm355 = vcmp.lt.s32.totalorder %v337, 0
      %v356 = vand.u32 %v337, 2139095040
      %v357 = vshrl.u32 %v356, 23
      %v358 = vsub.s32 %v357, 127
      %v359 = vand.u32 2147483647, %v337
      %v360 = vand.u32 %v359, 8388607
      %v361 = vor.u32 %v360, 8388608
      %v362 = vsub.s32 0, %v361
      %v363 = vadd.s32 %v358, 1
      %vm364 = vcmp.gt.s32.totalorder %v363, 0
      %v365 = vsel %vm364, %v363, 0
      %v366 = vshrl.u32 %v365, 5
      %v367 = vand.u32 %v365, 31
      %v368 = vsub.s32 32, %v367
      %v369 = vshrl.u32 683565275, %v368
      %v370 = vshll.u32 683565275, %v367
      %v371 = vshrl.u32 2475754826, %v368
      %v372 = vor.u32 %v370, %v371
      %v373 = vshll.u32 2475754826, %v367
      %v374 = vshrl.u32 2131351028, %v368
      %v375 = vor.u32 %v373, %v374
      %v376 = vshll.u32 2131351028, %v367
      %v377 = vshrl.u32 2102212464, %v368
      %v378 = vor.u32 %v376, %v377
      %v379 = vshll.u32 2102212464, %v367
      %v380 = vshrl.u32 920167782, %v368
      %v381 = vor.u32 %v379, %v380
      %v382 = vshll.u32 920167782, %v367
      %v383 = vshrl.u32 1326507024, %v368
      %v384 = vor.u32 %v382, %v383
      %vm385 = vcmp.lt.s32.totalorder %v366, 1
      %vm386 = vcmp.lt.s32.totalorder %v366, 2
      %vm387 = vcmp.lt.s32.totalorder %v366, 3
      %vm388 = vcmp.lt.s32.totalorder %v366, 4
      %v389 = vsel %vm385, %v369, %v372
      %v390 = vsel %vm388, %v378, 2102212464
      %v391 = vsel %vm387, %v375, %v390
      %v392 = vsel %vm386, %v389, %v391
      %v393 = vsel %vm385, %v372, %v375
      %v394 = vsel %vm388, %v381, 920167782
      %v395 = vsel %vm387, %v378, %v394
      %v396 = vsel %vm386, %v393, %v395
      %v397 = vsel %vm385, %v375, %v378
      %v398 = vsel %vm388, %v384, 1326507024
      %v399 = vsel %vm387, %v381, %v398
      %v400 = vsel %vm386, %v397, %v399
      %v401 = vshll.u32 %v361, 8
      %v402 = vmul.u32.u64.compose %v401, %v400
      %v403 = vextract.low.u32 %v402
      %v404 = vextract.high.u32 %v402
      %v405 = vmul.u32.u64.compose %v401, %v396
      %v406 = vextract.low.u32 %v405
      %v407 = vextract.high.u32 %v405
      %v408 = vmul.u32 %v401, %v392
      %v409 = vadd.s32 %v404, %v406
      %vm410 = vc.u32 %v404, %v406
      %v411 = vadd.s32 %v407, 1
      %v412 = vsel %vm410, %v411, %v407
      %v413 = vadd.s32 %v408, %v412
      %v414 = vadd.s32 %v413, 536870912
      %v415 = vshrl.u32 %v414, 30
      %v416 = vshll.u32 %v415, 30
      %v417 = vsub.s32 %v413, %v416
      %vm418 = vcmp.lt.s32.totalorder %v417, 0
      %v419 = vsub.s32 0, %v417
      %v420 = vsel %vm418, %v419, %v417
      %v421 = vclz %v420
      %v422 = vsub.s32 %v421, 2
      %vm423 = vcmp.gt.s32.totalorder 0, %v422
      %v424 = vsel %vm423, 0, %v422
      %v425 = vsub.s32 32, %v424
      %v426 = vshll.u32 %v417, %v424
      %v427 = vshrl.u32 %v409, %v425
      %v428 = vor.u32 %v426, %v427
      %v429 = vsub.s32 4294967266, %v424
      %v430 = vadd.s32 %v429, 127
      %v431 = vshll.u32 %v430, 23
      %v432 = vor.u32 4788187, %v431
      %v433 = vand.u32 2147483647, %v432
      %v435 = vcvt.s32.f32 %v428
      %v436 = vmul.f32 %v435, %v433
      %v437 = vxor.u32 %v436, 2147483648
      %v438 = vsel %vm355, %v437, %v436
      %v439 = vsub.s32 4, %v415
      %v440 = vsel %vm355, %v439, %v415
      %v441 = vsel %vm354, %v337, %v438
      %v442 = vsel %vm354, 0, %v440
      %v443 = vcosq.f32.pop %v441
      %v444 = vsinq.f32.pop %v441
      %vm445 = vweird.f32 %v337
      %v446 = vadd.s32 %v442, 3
      %v447 = vand.u32 %v446, 3
      %vm448 = vcmp.lt.s32.totalorder %v447, 2
      %vm449 = vcmp.eq.s32.totalorder %v447, 0
      %v450 = vxor.u32 %v444, 2147483648
      %v451 = vsel %vm449, %v443, %v450
      %vm452 = vcmp.eq.s32.totalorder %v447, 2
      %v453 = vxor.u32 %v443, 2147483648
      %v454 = vsel %vm452, %v453, %v444
      %v455 = vsel %vm448, %v451, %v454
      %v456 = vsel %vm445, nan, %v455
      %v457 = vand.u32 2147483647, %v338
      %vm458 = vcmp.le.f32.partialorder %v457, 0.7853982
      %vm459 = vcmp.lt.s32.totalorder %v338, 0
      %v460 = vand.u32 %v338, 2139095040
      %v461 = vshrl.u32 %v460, 23
      %v462 = vsub.s32 %v461, 127
      %v463 = vand.u32 2147483647, %v338
      %v464 = vand.u32 %v463, 8388607
      %v465 = vor.u32 %v464, 8388608
      %v466 = vsub.s32 0, %v465
      %v467 = vadd.s32 %v462, 1
      %vm468 = vcmp.gt.s32.totalorder %v467, 0
      %v469 = vsel %vm468, %v467, 0
      %v470 = vshrl.u32 %v469, 5
      %v471 = vand.u32 %v469, 31
      %v472 = vsub.s32 32, %v471
      %v473 = vshrl.u32 683565275, %v472
      %v474 = vshll.u32 683565275, %v471
      %v475 = vshrl.u32 2475754826, %v472
      %v476 = vor.u32 %v474, %v475
      %v477 = vshll.u32 2475754826, %v471
      %v478 = vshrl.u32 2131351028, %v472
      %v479 = vor.u32 %v477, %v478
      %v480 = vshll.u32 2131351028, %v471
      %v481 = vshrl.u32 2102212464, %v472
      %v482 = vor.u32 %v480, %v481
      %v483 = vshll.u32 2102212464, %v471
      %v484 = vshrl.u32 920167782, %v472
      %v485 = vor.u32 %v483, %v484
      %v486 = vshll.u32 920167782, %v471
      %v487 = vshrl.u32 1326507024, %v472
      %v488 = vor.u32 %v486, %v487
      %vm489 = vcmp.lt.s32.totalorder %v470, 1
      %vm490 = vcmp.lt.s32.totalorder %v470, 2
      %vm491 = vcmp.lt.s32.totalorder %v470, 3
      %vm492 = vcmp.lt.s32.totalorder %v470, 4
      %v493 = vsel %vm489, %v473, %v476
      %v494 = vsel %vm492, %v482, 2102212464
      %v495 = vsel %vm491, %v479, %v494
      %v496 = vsel %vm490, %v493, %v495
      %v497 = vsel %vm489, %v476, %v479
      %v498 = vsel %vm492, %v485, 920167782
      %v499 = vsel %vm491, %v482, %v498
      %v500 = vsel %vm490, %v497, %v499
      %v501 = vsel %vm489, %v479, %v482
      %v502 = vsel %vm492, %v488, 1326507024
      %v503 = vsel %vm491, %v485, %v502
      %v504 = vsel %vm490, %v501, %v503
      %v505 = vshll.u32 %v465, 8
      %v506 = vmul.u32.u64.compose %v505, %v504
      %v507 = vextract.low.u32 %v506
      %v508 = vextract.high.u32 %v506
      %v509 = vmul.u32.u64.compose %v505, %v500
      %v510 = vextract.low.u32 %v509
      %v511 = vextract.high.u32 %v509
      %v512 = vmul.u32 %v505, %v496
      %v513 = vadd.s32 %v508, %v510
      %vm514 = vc.u32 %v508, %v510
      %v515 = vadd.s32 %v511, 1
      %v516 = vsel %vm514, %v515, %v511
      %v517 = vadd.s32 %v512, %v516
      %v518 = vadd.s32 %v517, 536870912
      %v519 = vshrl.u32 %v518, 30
      %v520 = vshll.u32 %v519, 30
      %v521 = vsub.s32 %v517, %v520
      %vm522 = vcmp.lt.s32.totalorder %v521, 0
      %v523 = vsub.s32 0, %v521
      %v524 = vsel %vm522, %v523, %v521
      %v525 = vclz %v524
      %v526 = vsub.s32 %v525, 2
      %vm527 = vcmp.gt.s32.totalorder 0, %v526
      %v528 = vsel %vm527, 0, %v526
      %v529 = vsub.s32 32, %v528
      %v530 = vshll.u32 %v521, %v528
      %v531 = vshrl.u32 %v513, %v529
      %v532 = vor.u32 %v530, %v531
      %v533 = vsub.s32 4294967266, %v528
      %v534 = vadd.s32 %v533, 127
      %v535 = vshll.u32 %v534, 23
      %v536 = vor.u32 4788187, %v535
      %v537 = vand.u32 2147483647, %v536
      %v539 = vcvt.s32.f32 %v532
      %v540 = vmul.f32 %v539, %v537
      %v541 = vxor.u32 %v540, 2147483648
      %v542 = vsel %vm459, %v541, %v540
      %v543 = vsub.s32 4, %v519
      %v544 = vsel %vm459, %v543, %v519
      %v545 = vsel %vm458, %v338, %v542
      %v546 = vsel %vm458, 0, %v544
      %v547 = vcosq.f32.pop %v545
      %v548 = vsinq.f32.pop %v545
      %vm549 = vweird.f32 %v338
      %v550 = vadd.s32 %v546, 3
      %v551 = vand.u32 %v550, 3
      %vm552 = vcmp.lt.s32.totalorder %v551, 2
      %vm553 = vcmp.eq.s32.totalorder %v551, 0
      %v554 = vxor.u32 %v548, 2147483648
      %v555 = vsel %vm553, %v547, %v554
      %vm556 = vcmp.eq.s32.totalorder %v551, 2
      %v557 = vxor.u32 %v547, 2147483648
      %v558 = vsel %vm556, %v557, %v548
      %v559 = vsel %vm552, %v555, %v558
      %v560 = vsel %vm549, nan, %v559
      %v561 = vand.u32 2147483647, %v339
      %vm562 = vcmp.le.f32.partialorder %v561, 0.7853982
      %vm563 = vcmp.lt.s32.totalorder %v339, 0
      %v564 = vand.u32 %v339, 2139095040
      %v565 = vshrl.u32 %v564, 23
      %v566 = vsub.s32 %v565, 127
      %v567 = vand.u32 2147483647, %v339
      %v568 = vand.u32 %v567, 8388607
      %v569 = vor.u32 %v568, 8388608
      %v570 = vsub.s32 0, %v569
      %v571 = vadd.s32 %v566, 1
      %vm572 = vcmp.gt.s32.totalorder %v571, 0
      %v573 = vsel %vm572, %v571, 0
      %v574 = vshrl.u32 %v573, 5
      %v575 = vand.u32 %v573, 31
      %v576 = vsub.s32 32, %v575
      %v577 = vshrl.u32 683565275, %v576
      %v578 = vshll.u32 683565275, %v575
      %v579 = vshrl.u32 2475754826, %v576
      %v580 = vor.u32 %v578, %v579
      %v581 = vshll.u32 2475754826, %v575
      %v582 = vshrl.u32 2131351028, %v576
      %v583 = vor.u32 %v581, %v582
      %v584 = vshll.u32 2131351028, %v575
      %v585 = vshrl.u32 2102212464, %v576
      %v586 = vor.u32 %v584, %v585
      %v587 = vshll.u32 2102212464, %v575
      %v588 = vshrl.u32 920167782, %v576
      %v589 = vor.u32 %v587, %v588
      %v590 = vshll.u32 920167782, %v575
      %v591 = vshrl.u32 1326507024, %v576
      %v592 = vor.u32 %v590, %v591
      %vm593 = vcmp.lt.s32.totalorder %v574, 1
      %vm594 = vcmp.lt.s32.totalorder %v574, 2
      %vm595 = vcmp.lt.s32.totalorder %v574, 3
      %vm596 = vcmp.lt.s32.totalorder %v574, 4
      %v597 = vsel %vm593, %v577, %v580
      %v598 = vsel %vm596, %v586, 2102212464
      %v599 = vsel %vm595, %v583, %v598
      %v600 = vsel %vm594, %v597, %v599
      %v601 = vsel %vm593, %v580, %v583
      %v602 = vsel %vm596, %v589, 920167782
      %v603 = vsel %vm595, %v586, %v602
      %v604 = vsel %vm594, %v601, %v603
      %v605 = vsel %vm593, %v583, %v586
      %v606 = vsel %vm596, %v592, 1326507024
      %v607 = vsel %vm595, %v589, %v606
      %v608 = vsel %vm594, %v605, %v607
      %v609 = vshll.u32 %v569, 8
      %v610 = vmul.u32.u64.compose %v609, %v608
      %v611 = vextract.low.u32 %v610
      %v612 = vextract.high.u32 %v610
      %v613 = vmul.u32.u64.compose %v609, %v604
      %v614 = vextract.low.u32 %v613
      %v615 = vextract.high.u32 %v613
      %v616 = vmul.u32 %v609, %v600
      %v617 = vadd.s32 %v612, %v614
      %vm618 = vc.u32 %v612, %v614
      %v619 = vadd.s32 %v615, 1
      %v620 = vsel %vm618, %v619, %v615
      %v621 = vadd.s32 %v616, %v620
      %v622 = vadd.s32 %v621, 536870912
      %v623 = vshrl.u32 %v622, 30
      %v624 = vshll.u32 %v623, 30
      %v625 = vsub.s32 %v621, %v624
      %vm626 = vcmp.lt.s32.totalorder %v625, 0
      %v627 = vsub.s32 0, %v625
      %v628 = vsel %vm626, %v627, %v625
      %v629 = vclz %v628
      %v630 = vsub.s32 %v629, 2
      %vm631 = vcmp.gt.s32.totalorder 0, %v630
      %v632 = vsel %vm631, 0, %v630
      %v633 = vsub.s32 32, %v632
      %v634 = vshll.u32 %v625, %v632
      %v635 = vshrl.u32 %v617, %v633
      %v636 = vor.u32 %v634, %v635
      %v637 = vsub.s32 4294967266, %v632
      %v638 = vadd.s32 %v637, 127
      %v639 = vshll.u32 %v638, 23
      %v640 = vor.u32 4788187, %v639
      %v641 = vand.u32 2147483647, %v640
      %v643 = vcvt.s32.f32 %v636
      %v644 = vmul.f32 %v643, %v641
      %v645 = vxor.u32 %v644, 2147483648
      %v646 = vsel %vm563, %v645, %v644
      %v647 = vsub.s32 4, %v623
      %v648 = vsel %vm563, %v647, %v623
      %v649 = vsel %vm562, %v339, %v646
      %v650 = vsel %vm562, 0, %v648
      %v651 = vcosq.f32.pop %v649
      %v652 = vsinq.f32.pop %v649
      %vm653 = vweird.f32 %v339
      %v654 = vadd.s32 %v650, 3
      %v655 = vand.u32 %v654, 3
      %vm656 = vcmp.lt.s32.totalorder %v655, 2
      %vm657 = vcmp.eq.s32.totalorder %v655, 0
      %v658 = vxor.u32 %v652, 2147483648
      %v659 = vsel %vm657, %v651, %v658
      %vm660 = vcmp.eq.s32.totalorder %v655, 2
      %v661 = vxor.u32 %v651, 2147483648
      %v662 = vsel %vm660, %v661, %v652
      %v663 = vsel %vm656, %v659, %v662
      %v664 = vsel %vm653, nan, %v663
      %v665 = vand.u32 2147483647, %v340
      %vm666 = vcmp.le.f32.partialorder %v665, 0.7853982
      %vm667 = vcmp.lt.s32.totalorder %v340, 0
      %v668 = vand.u32 %v340, 2139095040
      %v669 = vshrl.u32 %v668, 23
      %v670 = vsub.s32 %v669, 127
      %v671 = vand.u32 2147483647, %v340
      %v672 = vand.u32 %v671, 8388607
      %v673 = vor.u32 %v672, 8388608
      %v674 = vsub.s32 0, %v673
      %v675 = vadd.s32 %v670, 1
      %vm676 = vcmp.gt.s32.totalorder %v675, 0
      %v677 = vsel %vm676, %v675, 0
      %v678 = vshrl.u32 %v677, 5
      %v679 = vand.u32 %v677, 31
      %v680 = vsub.s32 32, %v679
      %v681 = vshrl.u32 683565275, %v680
      %v682 = vshll.u32 683565275, %v679
      %v683 = vshrl.u32 2475754826, %v680
      %v684 = vor.u32 %v682, %v683
      %v685 = vshll.u32 2475754826, %v679
      %v686 = vshrl.u32 2131351028, %v680
      %v687 = vor.u32 %v685, %v686
      %v688 = vshll.u32 2131351028, %v679
      %v689 = vshrl.u32 2102212464, %v680
      %v690 = vor.u32 %v688, %v689
      %v691 = vshll.u32 2102212464, %v679
      %v692 = vshrl.u32 920167782, %v680
      %v693 = vor.u32 %v691, %v692
      %v694 = vshll.u32 920167782, %v679
      %v695 = vshrl.u32 1326507024, %v680
      %v696 = vor.u32 %v694, %v695
      %vm697 = vcmp.lt.s32.totalorder %v678, 1
      %vm698 = vcmp.lt.s32.totalorder %v678, 2
      %vm699 = vcmp.lt.s32.totalorder %v678, 3
      %vm700 = vcmp.lt.s32.totalorder %v678, 4
      %v701 = vsel %vm697, %v681, %v684
      %v702 = vsel %vm700, %v690, 2102212464
      %v703 = vsel %vm699, %v687, %v702
      %v704 = vsel %vm698, %v701, %v703
      %v705 = vsel %vm697, %v684, %v687
      %v706 = vsel %vm700, %v693, 920167782
      %v707 = vsel %vm699, %v690, %v706
      %v708 = vsel %vm698, %v705, %v707
      %v709 = vsel %vm697, %v687, %v690
      %v710 = vsel %vm700, %v696, 1326507024
      %v711 = vsel %vm699, %v693, %v710
      %v712 = vsel %vm698, %v709, %v711
      %v713 = vshll.u32 %v673, 8
      %v714 = vmul.u32.u64.compose %v713, %v712
      %v715 = vextract.low.u32 %v714
      %v716 = vextract.high.u32 %v714
      %v717 = vmul.u32.u64.compose %v713, %v708
      %v718 = vextract.low.u32 %v717
      %v719 = vextract.high.u32 %v717
      %v720 = vmul.u32 %v713, %v704
      %v721 = vadd.s32 %v716, %v718
      %vm722 = vc.u32 %v716, %v718
      %v723 = vadd.s32 %v719, 1
      %v724 = vsel %vm722, %v723, %v719
      %v725 = vadd.s32 %v720, %v724
      %v726 = vadd.s32 %v725, 536870912
      %v727 = vshrl.u32 %v726, 30
      %v728 = vshll.u32 %v727, 30
      %v729 = vsub.s32 %v725, %v728
      %vm730 = vcmp.lt.s32.totalorder %v729, 0
      %v731 = vsub.s32 0, %v729
      %v732 = vsel %vm730, %v731, %v729
      %v733 = vclz %v732
      %v734 = vsub.s32 %v733, 2
      %vm735 = vcmp.gt.s32.totalorder 0, %v734
      %v736 = vsel %vm735, 0, %v734
      %v737 = vsub.s32 32, %v736
      %v738 = vshll.u32 %v729, %v736
      %v739 = vshrl.u32 %v721, %v737
      %v740 = vor.u32 %v738, %v739
      %v741 = vsub.s32 4294967266, %v736
      %v742 = vadd.s32 %v741, 127
      %v743 = vshll.u32 %v742, 23
      %v744 = vor.u32 4788187, %v743
      %v745 = vand.u32 2147483647, %v744
      %v747 = vcvt.s32.f32 %v740
      %v748 = vmul.f32 %v747, %v745
      %v749 = vxor.u32 %v748, 2147483648
      %v750 = vsel %vm667, %v749, %v748
      %v751 = vsub.s32 4, %v727
      %v752 = vsel %vm667, %v751, %v727
      %v753 = vsel %vm666, %v340, %v750
      %v754 = vsel %vm666, 0, %v752
      %v755 = vcosq.f32.pop %v753
      %v756 = vsinq.f32.pop %v753
      %vm757 = vweird.f32 %v340
      %v758 = vadd.s32 %v754, 3
      %v759 = vand.u32 %v758, 3
      %vm760 = vcmp.lt.s32.totalorder %v759, 2
      %vm761 = vcmp.eq.s32.totalorder %v759, 0
      %v762 = vxor.u32 %v756, 2147483648
      %v763 = vsel %vm761, %v755, %v762
      %vm764 = vcmp.eq.s32.totalorder %v759, 2
      %v765 = vxor.u32 %v755, 2147483648
      %v766 = vsel %vm764, %v765, %v756
      %v767 = vsel %vm760, %v763, %v766
      %v768 = vsel %vm757, nan, %v767
      %v769 = vand.u32 2147483647, %v341
      %vm770 = vcmp.le.f32.partialorder %v769, 0.7853982
      %vm771 = vcmp.lt.s32.totalorder %v341, 0
      %v772 = vand.u32 %v341, 2139095040
      %v773 = vshrl.u32 %v772, 23
      %v774 = vsub.s32 %v773, 127
      %v775 = vand.u32 2147483647, %v341
      %v776 = vand.u32 %v775, 8388607
      %v777 = vor.u32 %v776, 8388608
      %v778 = vsub.s32 0, %v777
      %v779 = vadd.s32 %v774, 1
      %vm780 = vcmp.gt.s32.totalorder %v779, 0
      %v781 = vsel %vm780, %v779, 0
      %v782 = vshrl.u32 %v781, 5
      %v783 = vand.u32 %v781, 31
      %v784 = vsub.s32 32, %v783
      %v785 = vshrl.u32 683565275, %v784
      %v786 = vshll.u32 683565275, %v783
      %v787 = vshrl.u32 2475754826, %v784
      %v788 = vor.u32 %v786, %v787
      %v789 = vshll.u32 2475754826, %v783
      %v790 = vshrl.u32 2131351028, %v784
      %v791 = vor.u32 %v789, %v790
      %v792 = vshll.u32 2131351028, %v783
      %v793 = vshrl.u32 2102212464, %v784
      %v794 = vor.u32 %v792, %v793
      %v795 = vshll.u32 2102212464, %v783
      %v796 = vshrl.u32 920167782, %v784
      %v797 = vor.u32 %v795, %v796
      %v798 = vshll.u32 920167782, %v783
      %v799 = vshrl.u32 1326507024, %v784
      %v800 = vor.u32 %v798, %v799
      %vm801 = vcmp.lt.s32.totalorder %v782, 1
      %vm802 = vcmp.lt.s32.totalorder %v782, 2
      %vm803 = vcmp.lt.s32.totalorder %v782, 3
      %vm804 = vcmp.lt.s32.totalorder %v782, 4
      %v805 = vsel %vm801, %v785, %v788
      %v806 = vsel %vm804, %v794, 2102212464
      %v807 = vsel %vm803, %v791, %v806
      %v808 = vsel %vm802, %v805, %v807
      %v809 = vsel %vm801, %v788, %v791
      %v810 = vsel %vm804, %v797, 920167782
      %v811 = vsel %vm803, %v794, %v810
      %v812 = vsel %vm802, %v809, %v811
      %v813 = vsel %vm801, %v791, %v794
      %v814 = vsel %vm804, %v800, 1326507024
      %v815 = vsel %vm803, %v797, %v814
      %v816 = vsel %vm802, %v813, %v815
      %v817 = vshll.u32 %v777, 8
      %v818 = vmul.u32.u64.compose %v817, %v816
      %v819 = vextract.low.u32 %v818
      %v820 = vextract.high.u32 %v818
      %v821 = vmul.u32.u64.compose %v817, %v812
      %v822 = vextract.low.u32 %v821
      %v823 = vextract.high.u32 %v821
      %v824 = vmul.u32 %v817, %v808
      %v825 = vadd.s32 %v820, %v822
      %vm826 = vc.u32 %v820, %v822
      %v827 = vadd.s32 %v823, 1
      %v828 = vsel %vm826, %v827, %v823
      %v829 = vadd.s32 %v824, %v828
      %v830 = vadd.s32 %v829, 536870912
      %v831 = vshrl.u32 %v830, 30
      %v832 = vshll.u32 %v831, 30
      %v833 = vsub.s32 %v829, %v832
      %vm834 = vcmp.lt.s32.totalorder %v833, 0
      %v835 = vsub.s32 0, %v833
      %v836 = vsel %vm834, %v835, %v833
      %v837 = vclz %v836
      %v838 = vsub.s32 %v837, 2
      %vm839 = vcmp.gt.s32.totalorder 0, %v838
      %v840 = vsel %vm839, 0, %v838
      %v841 = vsub.s32 32, %v840
      %v842 = vshll.u32 %v833, %v840
      %v843 = vshrl.u32 %v825, %v841
      %v844 = vor.u32 %v842, %v843
      %v845 = vsub.s32 4294967266, %v840
      %v846 = vadd.s32 %v845, 127
      %v847 = vshll.u32 %v846, 23
      %v848 = vor.u32 4788187, %v847
      %v849 = vand.u32 2147483647, %v848
      %v851 = vcvt.s32.f32 %v844
      %v852 = vmul.f32 %v851, %v849
      %v853 = vxor.u32 %v852, 2147483648
      %v854 = vsel %vm771, %v853, %v852
      %v855 = vsub.s32 4, %v831
      %v856 = vsel %vm771, %v855, %v831
      %v857 = vsel %vm770, %v341, %v854
      %v858 = vsel %vm770, 0, %v856
      %v859 = vcosq.f32.pop %v857
      %v860 = vsinq.f32.pop %v857
      %vm861 = vweird.f32 %v341
      %v862 = vadd.s32 %v858, 3
      %v863 = vand.u32 %v862, 3
      %vm864 = vcmp.lt.s32.totalorder %v863, 2
      %vm865 = vcmp.eq.s32.totalorder %v863, 0
      %v866 = vxor.u32 %v860, 2147483648
      %v867 = vsel %vm865, %v859, %v866
      %vm868 = vcmp.eq.s32.totalorder %v863, 2
      %v869 = vxor.u32 %v859, 2147483648
      %v870 = vsel %vm868, %v869, %v860
      %v871 = vsel %vm864, %v867, %v870
      %v872 = vsel %vm861, nan, %v871
      %v873 = vand.u32 2147483647, %v342
      %vm874 = vcmp.le.f32.partialorder %v873, 0.7853982
      %vm875 = vcmp.lt.s32.totalorder %v342, 0
      %v876 = vand.u32 %v342, 2139095040
      %v877 = vshrl.u32 %v876, 23
      %v878 = vsub.s32 %v877, 127
      %v879 = vand.u32 2147483647, %v342
      %v880 = vand.u32 %v879, 8388607
      %v881 = vor.u32 %v880, 8388608
      %v882 = vsub.s32 0, %v881
      %v883 = vadd.s32 %v878, 1
      %vm884 = vcmp.gt.s32.totalorder %v883, 0
      %v885 = vsel %vm884, %v883, 0
      %v886 = vshrl.u32 %v885, 5
      %v887 = vand.u32 %v885, 31
      %v888 = vsub.s32 32, %v887
      %v889 = vshrl.u32 683565275, %v888
      %v890 = vshll.u32 683565275, %v887
      %v891 = vshrl.u32 2475754826, %v888
      %v892 = vor.u32 %v890, %v891
      %v893 = vshll.u32 2475754826, %v887
      %v894 = vshrl.u32 2131351028, %v888
      %v895 = vor.u32 %v893, %v894
      %v896 = vshll.u32 2131351028, %v887
      %v897 = vshrl.u32 2102212464, %v888
      %v898 = vor.u32 %v896, %v897
      %v899 = vshll.u32 2102212464, %v887
      %v900 = vshrl.u32 920167782, %v888
      %v901 = vor.u32 %v899, %v900
      %v902 = vshll.u32 920167782, %v887
      %v903 = vshrl.u32 1326507024, %v888
      %v904 = vor.u32 %v902, %v903
      %vm905 = vcmp.lt.s32.totalorder %v886, 1
      %vm906 = vcmp.lt.s32.totalorder %v886, 2
      %vm907 = vcmp.lt.s32.totalorder %v886, 3
      %vm908 = vcmp.lt.s32.totalorder %v886, 4
      %v909 = vsel %vm905, %v889, %v892
      %v910 = vsel %vm908, %v898, 2102212464
      %v911 = vsel %vm907, %v895, %v910
      %v912 = vsel %vm906, %v909, %v911
      %v913 = vsel %vm905, %v892, %v895
      %v914 = vsel %vm908, %v901, 920167782
      %v915 = vsel %vm907, %v898, %v914
      %v916 = vsel %vm906, %v913, %v915
      %v917 = vsel %vm905, %v895, %v898
      %v918 = vsel %vm908, %v904, 1326507024
      %v919 = vsel %vm907, %v901, %v918
      %v920 = vsel %vm906, %v917, %v919
      %v921 = vshll.u32 %v881, 8
      %v922 = vmul.u32.u64.compose %v921, %v920
      %v923 = vextract.low.u32 %v922
      %v924 = vextract.high.u32 %v922
      %v925 = vmul.u32.u64.compose %v921, %v916
      %v926 = vextract.low.u32 %v925
      %v927 = vextract.high.u32 %v925
      %v928 = vmul.u32 %v921, %v912
      %v929 = vadd.s32 %v924, %v926
      %vm930 = vc.u32 %v924, %v926
      %v931 = vadd.s32 %v927, 1
      %v932 = vsel %vm930, %v931, %v927
      %v933 = vadd.s32 %v928, %v932
      %v934 = vadd.s32 %v933, 536870912
      %v935 = vshrl.u32 %v934, 30
      %v936 = vshll.u32 %v935, 30
      %v937 = vsub.s32 %v933, %v936
      %vm938 = vcmp.lt.s32.totalorder %v937, 0
      %v939 = vsub.s32 0, %v937
      %v940 = vsel %vm938, %v939, %v937
      %v941 = vclz %v940
      %v942 = vsub.s32 %v941, 2
      %vm943 = vcmp.gt.s32.totalorder 0, %v942
      %v944 = vsel %vm943, 0, %v942
      %v945 = vsub.s32 32, %v944
      %v946 = vshll.u32 %v937, %v944
      %v947 = vshrl.u32 %v929, %v945
      %v948 = vor.u32 %v946, %v947
      %v949 = vsub.s32 4294967266, %v944
      %v950 = vadd.s32 %v949, 127
      %v951 = vshll.u32 %v950, 23
      %v952 = vor.u32 4788187, %v951
      %v953 = vand.u32 2147483647, %v952
      %v955 = vcvt.s32.f32 %v948
      %v956 = vmul.f32 %v955, %v953
      %v957 = vxor.u32 %v956, 2147483648
      %v958 = vsel %vm875, %v957, %v956
      %v959 = vsub.s32 4, %v935
      %v960 = vsel %vm875, %v959, %v935
      %v961 = vsel %vm874, %v342, %v958
      %v962 = vsel %vm874, 0, %v960
      %v963 = vcosq.f32.pop %v961
      %v964 = vsinq.f32.pop %v961
      %vm965 = vweird.f32 %v342
      %v966 = vadd.s32 %v962, 3
      %v967 = vand.u32 %v966, 3
      %vm968 = vcmp.lt.s32.totalorder %v967, 2
      %vm969 = vcmp.eq.s32.totalorder %v967, 0
      %v970 = vxor.u32 %v964, 2147483648
      %v971 = vsel %vm969, %v963, %v970
      %vm972 = vcmp.eq.s32.totalorder %v967, 2
      %v973 = vxor.u32 %v963, 2147483648
      %v974 = vsel %vm972, %v973, %v964
      %v975 = vsel %vm968, %v971, %v974
      %v976 = vsel %vm965, nan, %v975
      %v977 = vand.u32 2147483647, %v343
      %vm978 = vcmp.le.f32.partialorder %v977, 0.7853982
      %vm979 = vcmp.lt.s32.totalorder %v343, 0
      %v980 = vand.u32 %v343, 2139095040
      %v981 = vshrl.u32 %v980, 23
      %v982 = vsub.s32 %v981, 127
      %v983 = vand.u32 2147483647, %v343
      %v984 = vand.u32 %v983, 8388607
      %v985 = vor.u32 %v984, 8388608
      %v986 = vsub.s32 0, %v985
      %v987 = vadd.s32 %v982, 1
      %vm988 = vcmp.gt.s32.totalorder %v987, 0
      %v989 = vsel %vm988, %v987, 0
      %v990 = vshrl.u32 %v989, 5
      %v991 = vand.u32 %v989, 31
      %v992 = vsub.s32 32, %v991
      %v993 = vshrl.u32 683565275, %v992
      %v994 = vshll.u32 683565275, %v991
      %v995 = vshrl.u32 2475754826, %v992
      %v996 = vor.u32 %v994, %v995
      %v997 = vshll.u32 2475754826, %v991
      %v998 = vshrl.u32 2131351028, %v992
      %v999 = vor.u32 %v997, %v998
      %v1000 = vshll.u32 2131351028, %v991
      %v1001 = vshrl.u32 2102212464, %v992
      %v1002 = vor.u32 %v1000, %v1001
      %v1003 = vshll.u32 2102212464, %v991
      %v1004 = vshrl.u32 920167782, %v992
      %v1005 = vor.u32 %v1003, %v1004
      %v1006 = vshll.u32 920167782, %v991
      %v1007 = vshrl.u32 1326507024, %v992
      %v1008 = vor.u32 %v1006, %v1007
      %vm1009 = vcmp.lt.s32.totalorder %v990, 1
      %vm1010 = vcmp.lt.s32.totalorder %v990, 2
      %vm1011 = vcmp.lt.s32.totalorder %v990, 3
      %vm1012 = vcmp.lt.s32.totalorder %v990, 4
      %v1013 = vsel %vm1009, %v993, %v996
      %v1014 = vsel %vm1012, %v1002, 2102212464
      %v1015 = vsel %vm1011, %v999, %v1014
      %v1016 = vsel %vm1010, %v1013, %v1015
      %v1017 = vsel %vm1009, %v996, %v999
      %v1018 = vsel %vm1012, %v1005, 920167782
      %v1019 = vsel %vm1011, %v1002, %v1018
      %v1020 = vsel %vm1010, %v1017, %v1019
      %v1021 = vsel %vm1009, %v999, %v1002
      %v1022 = vsel %vm1012, %v1008, 1326507024
      %v1023 = vsel %vm1011, %v1005, %v1022
      %v1024 = vsel %vm1010, %v1021, %v1023
      %v1025 = vshll.u32 %v985, 8
      %v1026 = vmul.u32.u64.compose %v1025, %v1024
      %v1027 = vextract.low.u32 %v1026
      %v1028 = vextract.high.u32 %v1026
      %v1029 = vmul.u32.u64.compose %v1025, %v1020
      %v1030 = vextract.low.u32 %v1029
      %v1031 = vextract.high.u32 %v1029
      %v1032 = vmul.u32 %v1025, %v1016
      %v1033 = vadd.s32 %v1028, %v1030
      %vm1034 = vc.u32 %v1028, %v1030
      %v1035 = vadd.s32 %v1031, 1
      %v1036 = vsel %vm1034, %v1035, %v1031
      %v1037 = vadd.s32 %v1032, %v1036
      %v1038 = vadd.s32 %v1037, 536870912
      %v1039 = vshrl.u32 %v1038, 30
      %v1040 = vshll.u32 %v1039, 30
      %v1041 = vsub.s32 %v1037, %v1040
      %vm1042 = vcmp.lt.s32.totalorder %v1041, 0
      %v1043 = vsub.s32 0, %v1041
      %v1044 = vsel %vm1042, %v1043, %v1041
      %v1045 = vclz %v1044
      %v1046 = vsub.s32 %v1045, 2
      %vm1047 = vcmp.gt.s32.totalorder 0, %v1046
      %v1048 = vsel %vm1047, 0, %v1046
      %v1049 = vsub.s32 32, %v1048
      %v1050 = vshll.u32 %v1041, %v1048
      %v1051 = vshrl.u32 %v1033, %v1049
      %v1052 = vor.u32 %v1050, %v1051
      %v1053 = vsub.s32 4294967266, %v1048
      %v1054 = vadd.s32 %v1053, 127
      %v1055 = vshll.u32 %v1054, 23
      %v1056 = vor.u32 4788187, %v1055
      %v1057 = vand.u32 2147483647, %v1056
      %v1059 = vcvt.s32.f32 %v1052
      %v1060 = vmul.f32 %v1059, %v1057
      %v1061 = vxor.u32 %v1060, 2147483648
      %v1062 = vsel %vm979, %v1061, %v1060
      %v1063 = vsub.s32 4, %v1039
      %v1064 = vsel %vm979, %v1063, %v1039
      %v1065 = vsel %vm978, %v343, %v1062
      %v1066 = vsel %vm978, 0, %v1064
      %v1067 = vcosq.f32.pop %v1065
      %v1068 = vsinq.f32.pop %v1065
      %vm1069 = vweird.f32 %v343
      %v1070 = vadd.s32 %v1066, 3
      %v1071 = vand.u32 %v1070, 3
      %vm1072 = vcmp.lt.s32.totalorder %v1071, 2
      %vm1073 = vcmp.eq.s32.totalorder %v1071, 0
      %v1074 = vxor.u32 %v1068, 2147483648
      %v1075 = vsel %vm1073, %v1067, %v1074
      %vm1076 = vcmp.eq.s32.totalorder %v1071, 2
      %v1077 = vxor.u32 %v1067, 2147483648
      %v1078 = vsel %vm1076, %v1077, %v1068
      %v1079 = vsel %vm1072, %v1075, %v1078
      %v1080 = vsel %vm1069, nan, %v1079
      %v1081 = vand.u32 2147483647, %v344
      %vm1082 = vcmp.le.f32.partialorder %v1081, 0.7853982
      %vm1083 = vcmp.lt.s32.totalorder %v344, 0
      %v1084 = vand.u32 %v344, 2139095040
      %v1085 = vshrl.u32 %v1084, 23
      %v1086 = vsub.s32 %v1085, 127
      %v1087 = vand.u32 2147483647, %v344
      %v1088 = vand.u32 %v1087, 8388607
      %v1089 = vor.u32 %v1088, 8388608
      %v1090 = vsub.s32 0, %v1089
      %v1091 = vadd.s32 %v1086, 1
      %vm1092 = vcmp.gt.s32.totalorder %v1091, 0
      %v1093 = vsel %vm1092, %v1091, 0
      %v1094 = vshrl.u32 %v1093, 5
      %v1095 = vand.u32 %v1093, 31
      %v1096 = vsub.s32 32, %v1095
      %v1097 = vshrl.u32 683565275, %v1096
      %v1098 = vshll.u32 683565275, %v1095
      %v1099 = vshrl.u32 2475754826, %v1096
      %v1100 = vor.u32 %v1098, %v1099
      %v1101 = vshll.u32 2475754826, %v1095
      %v1102 = vshrl.u32 2131351028, %v1096
      %v1103 = vor.u32 %v1101, %v1102
      %v1104 = vshll.u32 2131351028, %v1095
      %v1105 = vshrl.u32 2102212464, %v1096
      %v1106 = vor.u32 %v1104, %v1105
      %v1107 = vshll.u32 2102212464, %v1095
      %v1108 = vshrl.u32 920167782, %v1096
      %v1109 = vor.u32 %v1107, %v1108
      %v1110 = vshll.u32 920167782, %v1095
      %v1111 = vshrl.u32 1326507024, %v1096
      %v1112 = vor.u32 %v1110, %v1111
      %vm1113 = vcmp.lt.s32.totalorder %v1094, 1
      %vm1114 = vcmp.lt.s32.totalorder %v1094, 2
      %vm1115 = vcmp.lt.s32.totalorder %v1094, 3
      %vm1116 = vcmp.lt.s32.totalorder %v1094, 4
      %v1117 = vsel %vm1113, %v1097, %v1100
      %v1118 = vsel %vm1116, %v1106, 2102212464
      %v1119 = vsel %vm1115, %v1103, %v1118
      %v1120 = vsel %vm1114, %v1117, %v1119
      %v1121 = vsel %vm1113, %v1100, %v1103
      %v1122 = vsel %vm1116, %v1109, 920167782
      %v1123 = vsel %vm1115, %v1106, %v1122
      %v1124 = vsel %vm1114, %v1121, %v1123
      %v1125 = vsel %vm1113, %v1103, %v1106
      %v1126 = vsel %vm1116, %v1112, 1326507024
      %v1127 = vsel %vm1115, %v1109, %v1126
      %v1128 = vsel %vm1114, %v1125, %v1127
      %v1129 = vshll.u32 %v1089, 8
      %v1130 = vmul.u32.u64.compose %v1129, %v1128
      %v1131 = vextract.low.u32 %v1130
      %v1132 = vextract.high.u32 %v1130
      %v1133 = vmul.u32.u64.compose %v1129, %v1124
      %v1134 = vextract.low.u32 %v1133
      %v1135 = vextract.high.u32 %v1133
      %v1136 = vmul.u32 %v1129, %v1120
      %v1137 = vadd.s32 %v1132, %v1134
      %vm1138 = vc.u32 %v1132, %v1134
      %v1139 = vadd.s32 %v1135, 1
      %v1140 = vsel %vm1138, %v1139, %v1135
      %v1141 = vadd.s32 %v1136, %v1140
      %v1142 = vadd.s32 %v1141, 536870912
      %v1143 = vshrl.u32 %v1142, 30
      %v1144 = vshll.u32 %v1143, 30
      %v1145 = vsub.s32 %v1141, %v1144
      %vm1146 = vcmp.lt.s32.totalorder %v1145, 0
      %v1147 = vsub.s32 0, %v1145
      %v1148 = vsel %vm1146, %v1147, %v1145
      %v1149 = vclz %v1148
      %v1150 = vsub.s32 %v1149, 2
      %vm1151 = vcmp.gt.s32.totalorder 0, %v1150
      %v1152 = vsel %vm1151, 0, %v1150
      %v1153 = vsub.s32 32, %v1152
      %v1154 = vshll.u32 %v1145, %v1152
      %v1155 = vshrl.u32 %v1137, %v1153
      %v1156 = vor.u32 %v1154, %v1155
      %v1157 = vsub.s32 4294967266, %v1152
      %v1158 = vadd.s32 %v1157, 127
      %v1159 = vshll.u32 %v1158, 23
      %v1160 = vor.u32 4788187, %v1159
      %v1161 = vand.u32 2147483647, %v1160
      %v1163 = vcvt.s32.f32 %v1156
      %v1164 = vmul.f32 %v1163, %v1161
      %v1165 = vxor.u32 %v1164, 2147483648
      %v1166 = vsel %vm1083, %v1165, %v1164
      %v1167 = vsub.s32 4, %v1143
      %v1168 = vsel %vm1083, %v1167, %v1143
      %v1169 = vsel %vm1082, %v344, %v1166
      %v1170 = vsel %vm1082, 0, %v1168
      %v1171 = vcosq.f32.pop %v1169
      %v1172 = vsinq.f32.pop %v1169
      %vm1173 = vweird.f32 %v344
      %v1174 = vadd.s32 %v1170, 3
      %v1175 = vand.u32 %v1174, 3
      %vm1176 = vcmp.lt.s32.totalorder %v1175, 2
      %vm1177 = vcmp.eq.s32.totalorder %v1175, 0
      %v1178 = vxor.u32 %v1172, 2147483648
      %v1179 = vsel %vm1177, %v1171, %v1178
      %vm1180 = vcmp.eq.s32.totalorder %v1175, 2
      %v1181 = vxor.u32 %v1171, 2147483648
      %v1182 = vsel %vm1180, %v1181, %v1172
      %v1183 = vsel %vm1176, %v1179, %v1182
      %v1184 = vsel %vm1173, nan, %v1183
      %v1185 = vand.u32 2147483647, %v345
      %vm1186 = vcmp.le.f32.partialorder %v1185, 0.7853982
      %vm1187 = vcmp.lt.s32.totalorder %v345, 0
      %v1188 = vand.u32 %v345, 2139095040
      %v1189 = vshrl.u32 %v1188, 23
      %v1190 = vsub.s32 %v1189, 127
      %v1191 = vand.u32 2147483647, %v345
      %v1192 = vand.u32 %v1191, 8388607
      %v1193 = vor.u32 %v1192, 8388608
      %v1194 = vsub.s32 0, %v1193
      %v1195 = vadd.s32 %v1190, 1
      %vm1196 = vcmp.gt.s32.totalorder %v1195, 0
      %v1197 = vsel %vm1196, %v1195, 0
      %v1198 = vshrl.u32 %v1197, 5
      %v1199 = vand.u32 %v1197, 31
      %v1200 = vsub.s32 32, %v1199
      %v1201 = vshrl.u32 683565275, %v1200
      %v1202 = vshll.u32 683565275, %v1199
      %v1203 = vshrl.u32 2475754826, %v1200
      %v1204 = vor.u32 %v1202, %v1203
      %v1205 = vshll.u32 2475754826, %v1199
      %v1206 = vshrl.u32 2131351028, %v1200
      %v1207 = vor.u32 %v1205, %v1206
      %v1208 = vshll.u32 2131351028, %v1199
      %v1209 = vshrl.u32 2102212464, %v1200
      %v1210 = vor.u32 %v1208, %v1209
      %v1211 = vshll.u32 2102212464, %v1199
      %v1212 = vshrl.u32 920167782, %v1200
      %v1213 = vor.u32 %v1211, %v1212
      %v1214 = vshll.u32 920167782, %v1199
      %v1215 = vshrl.u32 1326507024, %v1200
      %v1216 = vor.u32 %v1214, %v1215
      %vm1217 = vcmp.lt.s32.totalorder %v1198, 1
      %vm1218 = vcmp.lt.s32.totalorder %v1198, 2
      %vm1219 = vcmp.lt.s32.totalorder %v1198, 3
      %vm1220 = vcmp.lt.s32.totalorder %v1198, 4
      %v1221 = vsel %vm1217, %v1201, %v1204
      %v1222 = vsel %vm1220, %v1210, 2102212464
      %v1223 = vsel %vm1219, %v1207, %v1222
      %v1224 = vsel %vm1218, %v1221, %v1223
      %v1225 = vsel %vm1217, %v1204, %v1207
      %v1226 = vsel %vm1220, %v1213, 920167782
      %v1227 = vsel %vm1219, %v1210, %v1226
      %v1228 = vsel %vm1218, %v1225, %v1227
      %v1229 = vsel %vm1217, %v1207, %v1210
      %v1230 = vsel %vm1220, %v1216, 1326507024
      %v1231 = vsel %vm1219, %v1213, %v1230
      %v1232 = vsel %vm1218, %v1229, %v1231
      %v1233 = vshll.u32 %v1193, 8
      %v1234 = vmul.u32.u64.compose %v1233, %v1232
      %v1235 = vextract.low.u32 %v1234
      %v1236 = vextract.high.u32 %v1234
      %v1237 = vmul.u32.u64.compose %v1233, %v1228
      %v1238 = vextract.low.u32 %v1237
      %v1239 = vextract.high.u32 %v1237
      %v1240 = vmul.u32 %v1233, %v1224
      %v1241 = vadd.s32 %v1236, %v1238
      %vm1242 = vc.u32 %v1236, %v1238
      %v1243 = vadd.s32 %v1239, 1
      %v1244 = vsel %vm1242, %v1243, %v1239
      %v1245 = vadd.s32 %v1240, %v1244
      %v1246 = vadd.s32 %v1245, 536870912
      %v1247 = vshrl.u32 %v1246, 30
      %v1248 = vshll.u32 %v1247, 30
      %v1249 = vsub.s32 %v1245, %v1248
      %vm1250 = vcmp.lt.s32.totalorder %v1249, 0
      %v1251 = vsub.s32 0, %v1249
      %v1252 = vsel %vm1250, %v1251, %v1249
      %v1253 = vclz %v1252
      %v1254 = vsub.s32 %v1253, 2
      %vm1255 = vcmp.gt.s32.totalorder 0, %v1254
      %v1256 = vsel %vm1255, 0, %v1254
      %v1257 = vsub.s32 32, %v1256
      %v1258 = vshll.u32 %v1249, %v1256
      %v1259 = vshrl.u32 %v1241, %v1257
      %v1260 = vor.u32 %v1258, %v1259
      %v1261 = vsub.s32 4294967266, %v1256
      %v1262 = vadd.s32 %v1261, 127
      %v1263 = vshll.u32 %v1262, 23
      %v1264 = vor.u32 4788187, %v1263
      %v1265 = vand.u32 2147483647, %v1264
      %v1267 = vcvt.s32.f32 %v1260
      %v1268 = vmul.f32 %v1267, %v1265
      %v1269 = vxor.u32 %v1268, 2147483648
      %v1270 = vsel %vm1187, %v1269, %v1268
      %v1271 = vsub.s32 4, %v1247
      %v1272 = vsel %vm1187, %v1271, %v1247
      %v1273 = vsel %vm1186, %v345, %v1270
      %v1274 = vsel %vm1186, 0, %v1272
      %v1275 = vcosq.f32.pop %v1273
      %v1276 = vsinq.f32.pop %v1273
      %vm1277 = vweird.f32 %v345
      %v1278 = vadd.s32 %v1274, 3
      %v1279 = vand.u32 %v1278, 3
      %vm1280 = vcmp.lt.s32.totalorder %v1279, 2
      %vm1281 = vcmp.eq.s32.totalorder %v1279, 0
      %v1282 = vxor.u32 %v1276, 2147483648
      %v1283 = vsel %vm1281, %v1275, %v1282
      %vm1284 = vcmp.eq.s32.totalorder %v1279, 2
      %v1285 = vxor.u32 %v1275, 2147483648
      %v1286 = vsel %vm1284, %v1285, %v1276
      %v1287 = vsel %vm1280, %v1283, %v1286
      %v1288 = vsel %vm1277, nan, %v1287
      %v1289 = vand.u32 2147483647, %v346
      %vm1290 = vcmp.le.f32.partialorder %v1289, 0.7853982
      %vm1291 = vcmp.lt.s32.totalorder %v346, 0
      %v1292 = vand.u32 %v346, 2139095040
      %v1293 = vshrl.u32 %v1292, 23
      %v1294 = vsub.s32 %v1293, 127
      %v1295 = vand.u32 2147483647, %v346
      %v1296 = vand.u32 %v1295, 8388607
      %v1297 = vor.u32 %v1296, 8388608
      %v1298 = vsub.s32 0, %v1297
      %v1299 = vadd.s32 %v1294, 1
      %vm1300 = vcmp.gt.s32.totalorder %v1299, 0
      %v1301 = vsel %vm1300, %v1299, 0
      %v1302 = vshrl.u32 %v1301, 5
      %v1303 = vand.u32 %v1301, 31
      %v1304 = vsub.s32 32, %v1303
      %v1305 = vshrl.u32 683565275, %v1304
      %v1306 = vshll.u32 683565275, %v1303
      %v1307 = vshrl.u32 2475754826, %v1304
      %v1308 = vor.u32 %v1306, %v1307
      %v1309 = vshll.u32 2475754826, %v1303
      %v1310 = vshrl.u32 2131351028, %v1304
      %v1311 = vor.u32 %v1309, %v1310
      %v1312 = vshll.u32 2131351028, %v1303
      %v1313 = vshrl.u32 2102212464, %v1304
      %v1314 = vor.u32 %v1312, %v1313
      %v1315 = vshll.u32 2102212464, %v1303
      %v1316 = vshrl.u32 920167782, %v1304
      %v1317 = vor.u32 %v1315, %v1316
      %v1318 = vshll.u32 920167782, %v1303
      %v1319 = vshrl.u32 1326507024, %v1304
      %v1320 = vor.u32 %v1318, %v1319
      %vm1321 = vcmp.lt.s32.totalorder %v1302, 1
      %vm1322 = vcmp.lt.s32.totalorder %v1302, 2
      %vm1323 = vcmp.lt.s32.totalorder %v1302, 3
      %vm1324 = vcmp.lt.s32.totalorder %v1302, 4
      %v1325 = vsel %vm1321, %v1305, %v1308
      %v1326 = vsel %vm1324, %v1314, 2102212464
      %v1327 = vsel %vm1323, %v1311, %v1326
      %v1328 = vsel %vm1322, %v1325, %v1327
      %v1329 = vsel %vm1321, %v1308, %v1311
      %v1330 = vsel %vm1324, %v1317, 920167782
      %v1331 = vsel %vm1323, %v1314, %v1330
      %v1332 = vsel %vm1322, %v1329, %v1331
      %v1333 = vsel %vm1321, %v1311, %v1314
      %v1334 = vsel %vm1324, %v1320, 1326507024
      %v1335 = vsel %vm1323, %v1317, %v1334
      %v1336 = vsel %vm1322, %v1333, %v1335
      %v1337 = vshll.u32 %v1297, 8
      %v1338 = vmul.u32.u64.compose %v1337, %v1336
      %v1339 = vextract.low.u32 %v1338
      %v1340 = vextract.high.u32 %v1338
      %v1341 = vmul.u32.u64.compose %v1337, %v1332
      %v1342 = vextract.low.u32 %v1341
      %v1343 = vextract.high.u32 %v1341
      %v1344 = vmul.u32 %v1337, %v1328
      %v1345 = vadd.s32 %v1340, %v1342
      %vm1346 = vc.u32 %v1340, %v1342
      %v1347 = vadd.s32 %v1343, 1
      %v1348 = vsel %vm1346, %v1347, %v1343
      %v1349 = vadd.s32 %v1344, %v1348
      %v1350 = vadd.s32 %v1349, 536870912
      %v1351 = vshrl.u32 %v1350, 30
      %v1352 = vshll.u32 %v1351, 30
      %v1353 = vsub.s32 %v1349, %v1352
      %vm1354 = vcmp.lt.s32.totalorder %v1353, 0
      %v1355 = vsub.s32 0, %v1353
      %v1356 = vsel %vm1354, %v1355, %v1353
      %v1357 = vclz %v1356
      %v1358 = vsub.s32 %v1357, 2
      %vm1359 = vcmp.gt.s32.totalorder 0, %v1358
      %v1360 = vsel %vm1359, 0, %v1358
      %v1361 = vsub.s32 32, %v1360
      %v1362 = vshll.u32 %v1353, %v1360
      %v1363 = vshrl.u32 %v1345, %v1361
      %v1364 = vor.u32 %v1362, %v1363
      %v1365 = vsub.s32 4294967266, %v1360
      %v1366 = vadd.s32 %v1365, 127
      %v1367 = vshll.u32 %v1366, 23
      %v1368 = vor.u32 4788187, %v1367
      %v1369 = vand.u32 2147483647, %v1368
      %v1371 = vcvt.s32.f32 %v1364
      %v1372 = vmul.f32 %v1371, %v1369
      %v1373 = vxor.u32 %v1372, 2147483648
      %v1374 = vsel %vm1291, %v1373, %v1372
      %v1375 = vsub.s32 4, %v1351
      %v1376 = vsel %vm1291, %v1375, %v1351
      %v1377 = vsel %vm1290, %v346, %v1374
      %v1378 = vsel %vm1290, 0, %v1376
      %v1379 = vcosq.f32.pop %v1377
      %v1380 = vsinq.f32.pop %v1377
      %vm1381 = vweird.f32 %v346
      %v1382 = vadd.s32 %v1378, 3
      %v1383 = vand.u32 %v1382, 3
      %vm1384 = vcmp.lt.s32.totalorder %v1383, 2
      %vm1385 = vcmp.eq.s32.totalorder %v1383, 0
      %v1386 = vxor.u32 %v1380, 2147483648
      %v1387 = vsel %vm1385, %v1379, %v1386
      %vm1388 = vcmp.eq.s32.totalorder %v1383, 2
      %v1389 = vxor.u32 %v1379, 2147483648
      %v1390 = vsel %vm1388, %v1389, %v1380
      %v1391 = vsel %vm1384, %v1387, %v1390
      %v1392 = vsel %vm1381, nan, %v1391
      %v1393 = vand.u32 2147483647, %v347
      %vm1394 = vcmp.le.f32.partialorder %v1393, 0.7853982
      %vm1395 = vcmp.lt.s32.totalorder %v347, 0
      %v1396 = vand.u32 %v347, 2139095040
      %v1397 = vshrl.u32 %v1396, 23
      %v1398 = vsub.s32 %v1397, 127
      %v1399 = vand.u32 2147483647, %v347
      %v1400 = vand.u32 %v1399, 8388607
      %v1401 = vor.u32 %v1400, 8388608
      %v1402 = vsub.s32 0, %v1401
      %v1403 = vadd.s32 %v1398, 1
      %vm1404 = vcmp.gt.s32.totalorder %v1403, 0
      %v1405 = vsel %vm1404, %v1403, 0
      %v1406 = vshrl.u32 %v1405, 5
      %v1407 = vand.u32 %v1405, 31
      %v1408 = vsub.s32 32, %v1407
      %v1409 = vshrl.u32 683565275, %v1408
      %v1410 = vshll.u32 683565275, %v1407
      %v1411 = vshrl.u32 2475754826, %v1408
      %v1412 = vor.u32 %v1410, %v1411
      %v1413 = vshll.u32 2475754826, %v1407
      %v1414 = vshrl.u32 2131351028, %v1408
      %v1415 = vor.u32 %v1413, %v1414
      %v1416 = vshll.u32 2131351028, %v1407
      %v1417 = vshrl.u32 2102212464, %v1408
      %v1418 = vor.u32 %v1416, %v1417
      %v1419 = vshll.u32 2102212464, %v1407
      %v1420 = vshrl.u32 920167782, %v1408
      %v1421 = vor.u32 %v1419, %v1420
      %v1422 = vshll.u32 920167782, %v1407
      %v1423 = vshrl.u32 1326507024, %v1408
      %v1424 = vor.u32 %v1422, %v1423
      %vm1425 = vcmp.lt.s32.totalorder %v1406, 1
      %vm1426 = vcmp.lt.s32.totalorder %v1406, 2
      %vm1427 = vcmp.lt.s32.totalorder %v1406, 3
      %vm1428 = vcmp.lt.s32.totalorder %v1406, 4
      %v1429 = vsel %vm1425, %v1409, %v1412
      %v1430 = vsel %vm1428, %v1418, 2102212464
      %v1431 = vsel %vm1427, %v1415, %v1430
      %v1432 = vsel %vm1426, %v1429, %v1431
      %v1433 = vsel %vm1425, %v1412, %v1415
      %v1434 = vsel %vm1428, %v1421, 920167782
      %v1435 = vsel %vm1427, %v1418, %v1434
      %v1436 = vsel %vm1426, %v1433, %v1435
      %v1437 = vsel %vm1425, %v1415, %v1418
      %v1438 = vsel %vm1428, %v1424, 1326507024
      %v1439 = vsel %vm1427, %v1421, %v1438
      %v1440 = vsel %vm1426, %v1437, %v1439
      %v1441 = vshll.u32 %v1401, 8
      %v1442 = vmul.u32.u64.compose %v1441, %v1440
      %v1443 = vextract.low.u32 %v1442
      %v1444 = vextract.high.u32 %v1442
      %v1445 = vmul.u32.u64.compose %v1441, %v1436
      %v1446 = vextract.low.u32 %v1445
      %v1447 = vextract.high.u32 %v1445
      %v1448 = vmul.u32 %v1441, %v1432
      %v1449 = vadd.s32 %v1444, %v1446
      %vm1450 = vc.u32 %v1444, %v1446
      %v1451 = vadd.s32 %v1447, 1
      %v1452 = vsel %vm1450, %v1451, %v1447
      %v1453 = vadd.s32 %v1448, %v1452
      %v1454 = vadd.s32 %v1453, 536870912
      %v1455 = vshrl.u32 %v1454, 30
      %v1456 = vshll.u32 %v1455, 30
      %v1457 = vsub.s32 %v1453, %v1456
      %vm1458 = vcmp.lt.s32.totalorder %v1457, 0
      %v1459 = vsub.s32 0, %v1457
      %v1460 = vsel %vm1458, %v1459, %v1457
      %v1461 = vclz %v1460
      %v1462 = vsub.s32 %v1461, 2
      %vm1463 = vcmp.gt.s32.totalorder 0, %v1462
      %v1464 = vsel %vm1463, 0, %v1462
      %v1465 = vsub.s32 32, %v1464
      %v1466 = vshll.u32 %v1457, %v1464
      %v1467 = vshrl.u32 %v1449, %v1465
      %v1468 = vor.u32 %v1466, %v1467
      %v1469 = vsub.s32 4294967266, %v1464
      %v1470 = vadd.s32 %v1469, 127
      %v1471 = vshll.u32 %v1470, 23
      %v1472 = vor.u32 4788187, %v1471
      %v1473 = vand.u32 2147483647, %v1472
      %v1475 = vcvt.s32.f32 %v1468
      %v1476 = vmul.f32 %v1475, %v1473
      %v1477 = vxor.u32 %v1476, 2147483648
      %v1478 = vsel %vm1395, %v1477, %v1476
      %v1479 = vsub.s32 4, %v1455
      %v1480 = vsel %vm1395, %v1479, %v1455
      %v1481 = vsel %vm1394, %v347, %v1478
      %v1482 = vsel %vm1394, 0, %v1480
      %v1483 = vcosq.f32.pop %v1481
      %v1484 = vsinq.f32.pop %v1481
      %vm1485 = vweird.f32 %v347
      %v1486 = vadd.s32 %v1482, 3
      %v1487 = vand.u32 %v1486, 3
      %vm1488 = vcmp.lt.s32.totalorder %v1487, 2
      %vm1489 = vcmp.eq.s32.totalorder %v1487, 0
      %v1490 = vxor.u32 %v1484, 2147483648
      %v1491 = vsel %vm1489, %v1483, %v1490
      %vm1492 = vcmp.eq.s32.totalorder %v1487, 2
      %v1493 = vxor.u32 %v1483, 2147483648
      %v1494 = vsel %vm1492, %v1493, %v1484
      %v1495 = vsel %vm1488, %v1491, %v1494
      %v1496 = vsel %vm1485, nan, %v1495
      %v1497 = vand.u32 2147483647, %v348
      %vm1498 = vcmp.le.f32.partialorder %v1497, 0.7853982
      %vm1499 = vcmp.lt.s32.totalorder %v348, 0
      %v1500 = vand.u32 %v348, 2139095040
      %v1501 = vshrl.u32 %v1500, 23
      %v1502 = vsub.s32 %v1501, 127
      %v1503 = vand.u32 2147483647, %v348
      %v1504 = vand.u32 %v1503, 8388607
      %v1505 = vor.u32 %v1504, 8388608
      %v1506 = vsub.s32 0, %v1505
      %v1507 = vadd.s32 %v1502, 1
      %vm1508 = vcmp.gt.s32.totalorder %v1507, 0
      %v1509 = vsel %vm1508, %v1507, 0
      %v1510 = vshrl.u32 %v1509, 5
      %v1511 = vand.u32 %v1509, 31
      %v1512 = vsub.s32 32, %v1511
      %v1513 = vshrl.u32 683565275, %v1512
      %v1514 = vshll.u32 683565275, %v1511
      %v1515 = vshrl.u32 2475754826, %v1512
      %v1516 = vor.u32 %v1514, %v1515
      %v1517 = vshll.u32 2475754826, %v1511
      %v1518 = vshrl.u32 2131351028, %v1512
      %v1519 = vor.u32 %v1517, %v1518
      %v1520 = vshll.u32 2131351028, %v1511
      %v1521 = vshrl.u32 2102212464, %v1512
      %v1522 = vor.u32 %v1520, %v1521
      %v1523 = vshll.u32 2102212464, %v1511
      %v1524 = vshrl.u32 920167782, %v1512
      %v1525 = vor.u32 %v1523, %v1524
      %v1526 = vshll.u32 920167782, %v1511
      %v1527 = vshrl.u32 1326507024, %v1512
      %v1528 = vor.u32 %v1526, %v1527
      %vm1529 = vcmp.lt.s32.totalorder %v1510, 1
      %vm1530 = vcmp.lt.s32.totalorder %v1510, 2
      %vm1531 = vcmp.lt.s32.totalorder %v1510, 3
      %vm1532 = vcmp.lt.s32.totalorder %v1510, 4
      %v1533 = vsel %vm1529, %v1513, %v1516
      %v1534 = vsel %vm1532, %v1522, 2102212464
      %v1535 = vsel %vm1531, %v1519, %v1534
      %v1536 = vsel %vm1530, %v1533, %v1535
      %v1537 = vsel %vm1529, %v1516, %v1519
      %v1538 = vsel %vm1532, %v1525, 920167782
      %v1539 = vsel %vm1531, %v1522, %v1538
      %v1540 = vsel %vm1530, %v1537, %v1539
      %v1541 = vsel %vm1529, %v1519, %v1522
      %v1542 = vsel %vm1532, %v1528, 1326507024
      %v1543 = vsel %vm1531, %v1525, %v1542
      %v1544 = vsel %vm1530, %v1541, %v1543
      %v1545 = vshll.u32 %v1505, 8
      %v1546 = vmul.u32.u64.compose %v1545, %v1544
      %v1547 = vextract.low.u32 %v1546
      %v1548 = vextract.high.u32 %v1546
      %v1549 = vmul.u32.u64.compose %v1545, %v1540
      %v1550 = vextract.low.u32 %v1549
      %v1551 = vextract.high.u32 %v1549
      %v1552 = vmul.u32 %v1545, %v1536
      %v1553 = vadd.s32 %v1548, %v1550
      %vm1554 = vc.u32 %v1548, %v1550
      %v1555 = vadd.s32 %v1551, 1
      %v1556 = vsel %vm1554, %v1555, %v1551
      %v1557 = vadd.s32 %v1552, %v1556
      %v1558 = vadd.s32 %v1557, 536870912
      %v1559 = vshrl.u32 %v1558, 30
      %v1560 = vshll.u32 %v1559, 30
      %v1561 = vsub.s32 %v1557, %v1560
      %vm1562 = vcmp.lt.s32.totalorder %v1561, 0
      %v1563 = vsub.s32 0, %v1561
      %v1564 = vsel %vm1562, %v1563, %v1561
      %v1565 = vclz %v1564
      %v1566 = vsub.s32 %v1565, 2
      %vm1567 = vcmp.gt.s32.totalorder 0, %v1566
      %v1568 = vsel %vm1567, 0, %v1566
      %v1569 = vsub.s32 32, %v1568
      %v1570 = vshll.u32 %v1561, %v1568
      %v1571 = vshrl.u32 %v1553, %v1569
      %v1572 = vor.u32 %v1570, %v1571
      %v1573 = vsub.s32 4294967266, %v1568
      %v1574 = vadd.s32 %v1573, 127
      %v1575 = vshll.u32 %v1574, 23
      %v1576 = vor.u32 4788187, %v1575
      %v1577 = vand.u32 2147483647, %v1576
      %v1579 = vcvt.s32.f32 %v1572
      %v1580 = vmul.f32 %v1579, %v1577
      %v1581 = vxor.u32 %v1580, 2147483648
      %v1582 = vsel %vm1499, %v1581, %v1580
      %v1583 = vsub.s32 4, %v1559
      %v1584 = vsel %vm1499, %v1583, %v1559
      %v1585 = vsel %vm1498, %v348, %v1582
      %v1586 = vsel %vm1498, 0, %v1584
      %v1587 = vcosq.f32.pop %v1585
      %v1588 = vsinq.f32.pop %v1585
      %vm1589 = vweird.f32 %v348
      %v1590 = vadd.s32 %v1586, 3
      %v1591 = vand.u32 %v1590, 3
      %vm1592 = vcmp.lt.s32.totalorder %v1591, 2
      %vm1593 = vcmp.eq.s32.totalorder %v1591, 0
      %v1594 = vxor.u32 %v1588, 2147483648
      %v1595 = vsel %vm1593, %v1587, %v1594
      %vm1596 = vcmp.eq.s32.totalorder %v1591, 2
      %v1597 = vxor.u32 %v1587, 2147483648
      %v1598 = vsel %vm1596, %v1597, %v1588
      %v1599 = vsel %vm1592, %v1595, %v1598
      %v1600 = vsel %vm1589, nan, %v1599
      %v1601 = vand.u32 2147483647, %v349
      %vm1602 = vcmp.le.f32.partialorder %v1601, 0.7853982
      %vm1603 = vcmp.lt.s32.totalorder %v349, 0
      %v1604 = vand.u32 %v349, 2139095040
      %v1605 = vshrl.u32 %v1604, 23
      %v1606 = vsub.s32 %v1605, 127
      %v1607 = vand.u32 2147483647, %v349
      %v1608 = vand.u32 %v1607, 8388607
      %v1609 = vor.u32 %v1608, 8388608
      %v1610 = vsub.s32 0, %v1609
      %v1611 = vadd.s32 %v1606, 1
      %vm1612 = vcmp.gt.s32.totalorder %v1611, 0
      %v1613 = vsel %vm1612, %v1611, 0
      %v1614 = vshrl.u32 %v1613, 5
      %v1615 = vand.u32 %v1613, 31
      %v1616 = vsub.s32 32, %v1615
      %v1617 = vshrl.u32 683565275, %v1616
      %v1618 = vshll.u32 683565275, %v1615
      %v1619 = vshrl.u32 2475754826, %v1616
      %v1620 = vor.u32 %v1618, %v1619
      %v1621 = vshll.u32 2475754826, %v1615
      %v1622 = vshrl.u32 2131351028, %v1616
      %v1623 = vor.u32 %v1621, %v1622
      %v1624 = vshll.u32 2131351028, %v1615
      %v1625 = vshrl.u32 2102212464, %v1616
      %v1626 = vor.u32 %v1624, %v1625
      %v1627 = vshll.u32 2102212464, %v1615
      %v1628 = vshrl.u32 920167782, %v1616
      %v1629 = vor.u32 %v1627, %v1628
      %v1630 = vshll.u32 920167782, %v1615
      %v1631 = vshrl.u32 1326507024, %v1616
      %v1632 = vor.u32 %v1630, %v1631
      %vm1633 = vcmp.lt.s32.totalorder %v1614, 1
      %vm1634 = vcmp.lt.s32.totalorder %v1614, 2
      %vm1635 = vcmp.lt.s32.totalorder %v1614, 3
      %vm1636 = vcmp.lt.s32.totalorder %v1614, 4
      %v1637 = vsel %vm1633, %v1617, %v1620
      %v1638 = vsel %vm1636, %v1626, 2102212464
      %v1639 = vsel %vm1635, %v1623, %v1638
      %v1640 = vsel %vm1634, %v1637, %v1639
      %v1641 = vsel %vm1633, %v1620, %v1623
      %v1642 = vsel %vm1636, %v1629, 920167782
      %v1643 = vsel %vm1635, %v1626, %v1642
      %v1644 = vsel %vm1634, %v1641, %v1643
      %v1645 = vsel %vm1633, %v1623, %v1626
      %v1646 = vsel %vm1636, %v1632, 1326507024
      %v1647 = vsel %vm1635, %v1629, %v1646
      %v1648 = vsel %vm1634, %v1645, %v1647
      %v1649 = vshll.u32 %v1609, 8
      %v1650 = vmul.u32.u64.compose %v1649, %v1648
      %v1651 = vextract.low.u32 %v1650
      %v1652 = vextract.high.u32 %v1650
      %v1653 = vmul.u32.u64.compose %v1649, %v1644
      %v1654 = vextract.low.u32 %v1653
      %v1655 = vextract.high.u32 %v1653
      %v1656 = vmul.u32 %v1649, %v1640
      %v1657 = vadd.s32 %v1652, %v1654
      %vm1658 = vc.u32 %v1652, %v1654
      %v1659 = vadd.s32 %v1655, 1
      %v1660 = vsel %vm1658, %v1659, %v1655
      %v1661 = vadd.s32 %v1656, %v1660
      %v1662 = vadd.s32 %v1661, 536870912
      %v1663 = vshrl.u32 %v1662, 30
      %v1664 = vshll.u32 %v1663, 30
      %v1665 = vsub.s32 %v1661, %v1664
      %vm1666 = vcmp.lt.s32.totalorder %v1665, 0
      %v1667 = vsub.s32 0, %v1665
      %v1668 = vsel %vm1666, %v1667, %v1665
      %v1669 = vclz %v1668
      %v1670 = vsub.s32 %v1669, 2
      %vm1671 = vcmp.gt.s32.totalorder 0, %v1670
      %v1672 = vsel %vm1671, 0, %v1670
      %v1673 = vsub.s32 32, %v1672
      %v1674 = vshll.u32 %v1665, %v1672
      %v1675 = vshrl.u32 %v1657, %v1673
      %v1676 = vor.u32 %v1674, %v1675
      %v1677 = vsub.s32 4294967266, %v1672
      %v1678 = vadd.s32 %v1677, 127
      %v1679 = vshll.u32 %v1678, 23
      %v1680 = vor.u32 4788187, %v1679
      %v1681 = vand.u32 2147483647, %v1680
      %v1683 = vcvt.s32.f32 %v1676
      %v1684 = vmul.f32 %v1683, %v1681
      %v1685 = vxor.u32 %v1684, 2147483648
      %v1686 = vsel %vm1603, %v1685, %v1684
      %v1687 = vsub.s32 4, %v1663
      %v1688 = vsel %vm1603, %v1687, %v1663
      %v1689 = vsel %vm1602, %v349, %v1686
      %v1690 = vsel %vm1602, 0, %v1688
      %v1691 = vcosq.f32.pop %v1689
      %v1692 = vsinq.f32.pop %v1689
      %vm1693 = vweird.f32 %v349
      %v1694 = vadd.s32 %v1690, 3
      %v1695 = vand.u32 %v1694, 3
      %vm1696 = vcmp.lt.s32.totalorder %v1695, 2
      %vm1697 = vcmp.eq.s32.totalorder %v1695, 0
      %v1698 = vxor.u32 %v1692, 2147483648
      %v1699 = vsel %vm1697, %v1691, %v1698
      %vm1700 = vcmp.eq.s32.totalorder %v1695, 2
      %v1701 = vxor.u32 %v1691, 2147483648
      %v1702 = vsel %vm1700, %v1701, %v1692
      %v1703 = vsel %vm1696, %v1699, %v1702
      %v1704 = vsel %vm1693, nan, %v1703
      %v1705 = vand.u32 2147483647, %v350
      %vm1706 = vcmp.le.f32.partialorder %v1705, 0.7853982
      %vm1707 = vcmp.lt.s32.totalorder %v350, 0
      %v1708 = vand.u32 %v350, 2139095040
      %v1709 = vshrl.u32 %v1708, 23
      %v1710 = vsub.s32 %v1709, 127
      %v1711 = vand.u32 2147483647, %v350
      %v1712 = vand.u32 %v1711, 8388607
      %v1713 = vor.u32 %v1712, 8388608
      %v1714 = vsub.s32 0, %v1713
      %v1715 = vadd.s32 %v1710, 1
      %vm1716 = vcmp.gt.s32.totalorder %v1715, 0
      %v1717 = vsel %vm1716, %v1715, 0
      %v1718 = vshrl.u32 %v1717, 5
      %v1719 = vand.u32 %v1717, 31
      %v1720 = vsub.s32 32, %v1719
      %v1721 = vshrl.u32 683565275, %v1720
      %v1722 = vshll.u32 683565275, %v1719
      %v1723 = vshrl.u32 2475754826, %v1720
      %v1724 = vor.u32 %v1722, %v1723
      %v1725 = vshll.u32 2475754826, %v1719
      %v1726 = vshrl.u32 2131351028, %v1720
      %v1727 = vor.u32 %v1725, %v1726
      %v1728 = vshll.u32 2131351028, %v1719
      %v1729 = vshrl.u32 2102212464, %v1720
      %v1730 = vor.u32 %v1728, %v1729
      %v1731 = vshll.u32 2102212464, %v1719
      %v1732 = vshrl.u32 920167782, %v1720
      %v1733 = vor.u32 %v1731, %v1732
      %v1734 = vshll.u32 920167782, %v1719
      %v1735 = vshrl.u32 1326507024, %v1720
      %v1736 = vor.u32 %v1734, %v1735
      %vm1737 = vcmp.lt.s32.totalorder %v1718, 1
      %vm1738 = vcmp.lt.s32.totalorder %v1718, 2
      %vm1739 = vcmp.lt.s32.totalorder %v1718, 3
      %vm1740 = vcmp.lt.s32.totalorder %v1718, 4
      %v1741 = vsel %vm1737, %v1721, %v1724
      %v1742 = vsel %vm1740, %v1730, 2102212464
      %v1743 = vsel %vm1739, %v1727, %v1742
      %v1744 = vsel %vm1738, %v1741, %v1743
      %v1745 = vsel %vm1737, %v1724, %v1727
      %v1746 = vsel %vm1740, %v1733, 920167782
      %v1747 = vsel %vm1739, %v1730, %v1746
      %v1748 = vsel %vm1738, %v1745, %v1747
      %v1749 = vsel %vm1737, %v1727, %v1730
      %v1750 = vsel %vm1740, %v1736, 1326507024
      %v1751 = vsel %vm1739, %v1733, %v1750
      %v1752 = vsel %vm1738, %v1749, %v1751
      %v1753 = vshll.u32 %v1713, 8
      %v1754 = vmul.u32.u64.compose %v1753, %v1752
      %v1755 = vextract.low.u32 %v1754
      %v1756 = vextract.high.u32 %v1754
      %v1757 = vmul.u32.u64.compose %v1753, %v1748
      %v1758 = vextract.low.u32 %v1757
      %v1759 = vextract.high.u32 %v1757
      %v1760 = vmul.u32 %v1753, %v1744
      %v1761 = vadd.s32 %v1756, %v1758
      %vm1762 = vc.u32 %v1756, %v1758
      %v1763 = vadd.s32 %v1759, 1
      %v1764 = vsel %vm1762, %v1763, %v1759
      %v1765 = vadd.s32 %v1760, %v1764
      %v1766 = vadd.s32 %v1765, 536870912
      %v1767 = vshrl.u32 %v1766, 30
      %v1768 = vshll.u32 %v1767, 30
      %v1769 = vsub.s32 %v1765, %v1768
      %vm1770 = vcmp.lt.s32.totalorder %v1769, 0
      %v1771 = vsub.s32 0, %v1769
      %v1772 = vsel %vm1770, %v1771, %v1769
      %v1773 = vclz %v1772
      %v1774 = vsub.s32 %v1773, 2
      %vm1775 = vcmp.gt.s32.totalorder 0, %v1774
      %v1776 = vsel %vm1775, 0, %v1774
      %v1777 = vsub.s32 32, %v1776
      %v1778 = vshll.u32 %v1769, %v1776
      %v1779 = vshrl.u32 %v1761, %v1777
      %v1780 = vor.u32 %v1778, %v1779
      %v1781 = vsub.s32 4294967266, %v1776
      %v1782 = vadd.s32 %v1781, 127
      %v1783 = vshll.u32 %v1782, 23
      %v1784 = vor.u32 4788187, %v1783
      %v1785 = vand.u32 2147483647, %v1784
      %v1787 = vcvt.s32.f32 %v1780
      %v1788 = vmul.f32 %v1787, %v1785
      %v1789 = vxor.u32 %v1788, 2147483648
      %v1790 = vsel %vm1707, %v1789, %v1788
      %v1791 = vsub.s32 4, %v1767
      %v1792 = vsel %vm1707, %v1791, %v1767
      %v1793 = vsel %vm1706, %v350, %v1790
      %v1794 = vsel %vm1706, 0, %v1792
      %v1795 = vcosq.f32.pop %v1793
      %v1796 = vsinq.f32.pop %v1793
      %vm1797 = vweird.f32 %v350
      %v1798 = vadd.s32 %v1794, 3
      %v1799 = vand.u32 %v1798, 3
      %vm1800 = vcmp.lt.s32.totalorder %v1799, 2
      %vm1801 = vcmp.eq.s32.totalorder %v1799, 0
      %v1802 = vxor.u32 %v1796, 2147483648
      %v1803 = vsel %vm1801, %v1795, %v1802
      %vm1804 = vcmp.eq.s32.totalorder %v1799, 2
      %v1805 = vxor.u32 %v1795, 2147483648
      %v1806 = vsel %vm1804, %v1805, %v1796
      %v1807 = vsel %vm1800, %v1803, %v1806
      %v1808 = vsel %vm1797, nan, %v1807
      %v1809 = vand.u32 2147483647, %v351
      %vm1810 = vcmp.le.f32.partialorder %v1809, 0.7853982
      %vm1811 = vcmp.lt.s32.totalorder %v351, 0
      %v1812 = vand.u32 %v351, 2139095040
      %v1813 = vshrl.u32 %v1812, 23
      %v1814 = vsub.s32 %v1813, 127
      %v1815 = vand.u32 2147483647, %v351
      %v1816 = vand.u32 %v1815, 8388607
      %v1817 = vor.u32 %v1816, 8388608
      %v1818 = vsub.s32 0, %v1817
      %v1819 = vadd.s32 %v1814, 1
      %vm1820 = vcmp.gt.s32.totalorder %v1819, 0
      %v1821 = vsel %vm1820, %v1819, 0
      %v1822 = vshrl.u32 %v1821, 5
      %v1823 = vand.u32 %v1821, 31
      %v1824 = vsub.s32 32, %v1823
      %v1825 = vshrl.u32 683565275, %v1824
      %v1826 = vshll.u32 683565275, %v1823
      %v1827 = vshrl.u32 2475754826, %v1824
      %v1828 = vor.u32 %v1826, %v1827
      %v1829 = vshll.u32 2475754826, %v1823
      %v1830 = vshrl.u32 2131351028, %v1824
      %v1831 = vor.u32 %v1829, %v1830
      %v1832 = vshll.u32 2131351028, %v1823
      %v1833 = vshrl.u32 2102212464, %v1824
      %v1834 = vor.u32 %v1832, %v1833
      %v1835 = vshll.u32 2102212464, %v1823
      %v1836 = vshrl.u32 920167782, %v1824
      %v1837 = vor.u32 %v1835, %v1836
      %v1838 = vshll.u32 920167782, %v1823
      %v1839 = vshrl.u32 1326507024, %v1824
      %v1840 = vor.u32 %v1838, %v1839
      %vm1841 = vcmp.lt.s32.totalorder %v1822, 1
      %vm1842 = vcmp.lt.s32.totalorder %v1822, 2
      %vm1843 = vcmp.lt.s32.totalorder %v1822, 3
      %vm1844 = vcmp.lt.s32.totalorder %v1822, 4
      %v1845 = vsel %vm1841, %v1825, %v1828
      %v1846 = vsel %vm1844, %v1834, 2102212464
      %v1847 = vsel %vm1843, %v1831, %v1846
      %v1848 = vsel %vm1842, %v1845, %v1847
      %v1849 = vsel %vm1841, %v1828, %v1831
      %v1850 = vsel %vm1844, %v1837, 920167782
      %v1851 = vsel %vm1843, %v1834, %v1850
      %v1852 = vsel %vm1842, %v1849, %v1851
      %v1853 = vsel %vm1841, %v1831, %v1834
      %v1854 = vsel %vm1844, %v1840, 1326507024
      %v1855 = vsel %vm1843, %v1837, %v1854
      %v1856 = vsel %vm1842, %v1853, %v1855
      %v1857 = vshll.u32 %v1817, 8
      %v1858 = vmul.u32.u64.compose %v1857, %v1856
      %v1859 = vextract.low.u32 %v1858
      %v1860 = vextract.high.u32 %v1858
      %v1861 = vmul.u32.u64.compose %v1857, %v1852
      %v1862 = vextract.low.u32 %v1861
      %v1863 = vextract.high.u32 %v1861
      %v1864 = vmul.u32 %v1857, %v1848
      %v1865 = vadd.s32 %v1860, %v1862
      %vm1866 = vc.u32 %v1860, %v1862
      %v1867 = vadd.s32 %v1863, 1
      %v1868 = vsel %vm1866, %v1867, %v1863
      %v1869 = vadd.s32 %v1864, %v1868
      %v1870 = vadd.s32 %v1869, 536870912
      %v1871 = vshrl.u32 %v1870, 30
      %v1872 = vshll.u32 %v1871, 30
      %v1873 = vsub.s32 %v1869, %v1872
      %vm1874 = vcmp.lt.s32.totalorder %v1873, 0
      %v1875 = vsub.s32 0, %v1873
      %v1876 = vsel %vm1874, %v1875, %v1873
      %v1877 = vclz %v1876
      %v1878 = vsub.s32 %v1877, 2
      %vm1879 = vcmp.gt.s32.totalorder 0, %v1878
      %v1880 = vsel %vm1879, 0, %v1878
      %v1881 = vsub.s32 32, %v1880
      %v1882 = vshll.u32 %v1873, %v1880
      %v1883 = vshrl.u32 %v1865, %v1881
      %v1884 = vor.u32 %v1882, %v1883
      %v1885 = vsub.s32 4294967266, %v1880
      %v1886 = vadd.s32 %v1885, 127
      %v1887 = vshll.u32 %v1886, 23
      %v1888 = vor.u32 4788187, %v1887
      %v1889 = vand.u32 2147483647, %v1888
      %v1891 = vcvt.s32.f32 %v1884
      %v1892 = vmul.f32 %v1891, %v1889
      %v1893 = vxor.u32 %v1892, 2147483648
      %v1894 = vsel %vm1811, %v1893, %v1892
      %v1895 = vsub.s32 4, %v1871
      %v1896 = vsel %vm1811, %v1895, %v1871
      %v1897 = vsel %vm1810, %v351, %v1894
      %v1898 = vsel %vm1810, 0, %v1896
      %v1899 = vcosq.f32.pop %v1897
      %v1900 = vsinq.f32.pop %v1897
      %vm1901 = vweird.f32 %v351
      %v1902 = vadd.s32 %v1898, 3
      %v1903 = vand.u32 %v1902, 3
      %vm1904 = vcmp.lt.s32.totalorder %v1903, 2
      %vm1905 = vcmp.eq.s32.totalorder %v1903, 0
      %v1906 = vxor.u32 %v1900, 2147483648
      %v1907 = vsel %vm1905, %v1899, %v1906
      %vm1908 = vcmp.eq.s32.totalorder %v1903, 2
      %v1909 = vxor.u32 %v1899, 2147483648
      %v1910 = vsel %vm1908, %v1909, %v1900
      %v1911 = vsel %vm1904, %v1907, %v1910
      %v1912 = vsel %vm1901, nan, %v1911
      %v1913 = vand.u32 2147483647, %v352
      %vm1914 = vcmp.le.f32.partialorder %v1913, 0.7853982
      %vm1915 = vcmp.lt.s32.totalorder %v352, 0
      %v1916 = vand.u32 %v352, 2139095040
      %v1917 = vshrl.u32 %v1916, 23
      %v1918 = vsub.s32 %v1917, 127
      %v1919 = vand.u32 2147483647, %v352
      %v1920 = vand.u32 %v1919, 8388607
      %v1921 = vor.u32 %v1920, 8388608
      %v1922 = vsub.s32 0, %v1921
      %v1923 = vadd.s32 %v1918, 1
      %vm1924 = vcmp.gt.s32.totalorder %v1923, 0
      %v1925 = vsel %vm1924, %v1923, 0
      %v1926 = vshrl.u32 %v1925, 5
      %v1927 = vand.u32 %v1925, 31
      %v1928 = vsub.s32 32, %v1927
      %v1929 = vshrl.u32 683565275, %v1928
      %v1930 = vshll.u32 683565275, %v1927
      %v1931 = vshrl.u32 2475754826, %v1928
      %v1932 = vor.u32 %v1930, %v1931
      %v1933 = vshll.u32 2475754826, %v1927
      %v1934 = vshrl.u32 2131351028, %v1928
      %v1935 = vor.u32 %v1933, %v1934
      %v1936 = vshll.u32 2131351028, %v1927
      %v1937 = vshrl.u32 2102212464, %v1928
      %v1938 = vor.u32 %v1936, %v1937
      %v1939 = vshll.u32 2102212464, %v1927
      %v1940 = vshrl.u32 920167782, %v1928
      %v1941 = vor.u32 %v1939, %v1940
      %v1942 = vshll.u32 920167782, %v1927
      %v1943 = vshrl.u32 1326507024, %v1928
      %v1944 = vor.u32 %v1942, %v1943
      %vm1945 = vcmp.lt.s32.totalorder %v1926, 1
      %vm1946 = vcmp.lt.s32.totalorder %v1926, 2
      %vm1947 = vcmp.lt.s32.totalorder %v1926, 3
      %vm1948 = vcmp.lt.s32.totalorder %v1926, 4
      %v1949 = vsel %vm1945, %v1929, %v1932
      %v1950 = vsel %vm1948, %v1938, 2102212464
      %v1951 = vsel %vm1947, %v1935, %v1950
      %v1952 = vsel %vm1946, %v1949, %v1951
      %v1953 = vsel %vm1945, %v1932, %v1935
      %v1954 = vsel %vm1948, %v1941, 920167782
      %v1955 = vsel %vm1947, %v1938, %v1954
      %v1956 = vsel %vm1946, %v1953, %v1955
      %v1957 = vsel %vm1945, %v1935, %v1938
      %v1958 = vsel %vm1948, %v1944, 1326507024
      %v1959 = vsel %vm1947, %v1941, %v1958
      %v1960 = vsel %vm1946, %v1957, %v1959
      %v1961 = vshll.u32 %v1921, 8
      %v1962 = vmul.u32.u64.compose %v1961, %v1960
      %v1963 = vextract.low.u32 %v1962
      %v1964 = vextract.high.u32 %v1962
      %v1965 = vmul.u32.u64.compose %v1961, %v1956
      %v1966 = vextract.low.u32 %v1965
      %v1967 = vextract.high.u32 %v1965
      %v1968 = vmul.u32 %v1961, %v1952
      %v1969 = vadd.s32 %v1964, %v1966
      %vm1970 = vc.u32 %v1964, %v1966
      %v1971 = vadd.s32 %v1967, 1
      %v1972 = vsel %vm1970, %v1971, %v1967
      %v1973 = vadd.s32 %v1968, %v1972
      %v1974 = vadd.s32 %v1973, 536870912
      %v1975 = vshrl.u32 %v1974, 30
      %v1976 = vshll.u32 %v1975, 30
      %v1977 = vsub.s32 %v1973, %v1976
      %vm1978 = vcmp.lt.s32.totalorder %v1977, 0
      %v1979 = vsub.s32 0, %v1977
      %v1980 = vsel %vm1978, %v1979, %v1977
      %v1981 = vclz %v1980
      %v1982 = vsub.s32 %v1981, 2
      %vm1983 = vcmp.gt.s32.totalorder 0, %v1982
      %v1984 = vsel %vm1983, 0, %v1982
      %v1985 = vsub.s32 32, %v1984
      %v1986 = vshll.u32 %v1977, %v1984
      %v1987 = vshrl.u32 %v1969, %v1985
      %v1988 = vor.u32 %v1986, %v1987
      %v1989 = vsub.s32 4294967266, %v1984
      %v1990 = vadd.s32 %v1989, 127
      %v1991 = vshll.u32 %v1990, 23
      %v1992 = vor.u32 4788187, %v1991
      %v1993 = vand.u32 2147483647, %v1992
      %v1995 = vcvt.s32.f32 %v1988
      %v1996 = vmul.f32 %v1995, %v1993
      %v1997 = vxor.u32 %v1996, 2147483648
      %v1998 = vsel %vm1915, %v1997, %v1996
      %v1999 = vsub.s32 4, %v1975
      %v2000 = vsel %vm1915, %v1999, %v1975
      %v2001 = vsel %vm1914, %v352, %v1998
      %v2002 = vsel %vm1914, 0, %v2000
      %v2003 = vcosq.f32.pop %v2001
      %v2004 = vsinq.f32.pop %v2001
      %vm2005 = vweird.f32 %v352
      %v2006 = vadd.s32 %v2002, 3
      %v2007 = vand.u32 %v2006, 3
      %vm2008 = vcmp.lt.s32.totalorder %v2007, 2
      %vm2009 = vcmp.eq.s32.totalorder %v2007, 0
      %v2010 = vxor.u32 %v2004, 2147483648
      %v2011 = vsel %vm2009, %v2003, %v2010
      %vm2012 = vcmp.eq.s32.totalorder %v2007, 2
      %v2013 = vxor.u32 %v2003, 2147483648
      %v2014 = vsel %vm2012, %v2013, %v2004
      %v2015 = vsel %vm2008, %v2011, %v2014
      %v2016 = vsel %vm2005, nan, %v2015
      %v2017 = vlaneseq
      %v2018 = vshrl.u32 %v2017, 7
      %v2019 = vadd.s32 %v2018, 8
      %v2020 = vadd.s32 %v2018, 16
      %v2021 = vadd.s32 %v2018, 24
      %v2022 = vadd.s32 %v2018, 32
      %v2023 = vadd.s32 %v2018, 40
      %v2024 = vadd.s32 %v2018, 48
      %v2025 = vadd.s32 %v2018, 56
      %vm2026 = vcmp.lt.s32.totalorder %v2018, 3
      %vm2027 = vcmp.lt.s32.totalorder %v2019, 3
      %vm2028 = vcmp.lt.s32.totalorder %v2020, 3
      %vm2029 = vcmp.lt.s32.totalorder %v2021, 3
      %vm2030 = vcmp.lt.s32.totalorder %v2022, 3
      %vm2031 = vcmp.lt.s32.totalorder %v2023, 3
      %vm2032 = vcmp.lt.s32.totalorder %v2024, 3
      %vm2033 = vcmp.lt.s32.totalorder %v2025, 3
      %v2034 = vsel %vm2026, 1, 0
      %v2035 = vsel %vm2027, 1, 0
      %v2036 = vsel %vm2028, 1, 0
      %v2037 = vsel %vm2029, 1, 0
      %v2038 = vsel %vm2030, 1, 0
      %v2039 = vsel %vm2031, 1, 0
      %v2040 = vsel %vm2032, 1, 0
      %v2041 = vsel %vm2033, 1, 0
      %vm2042 = vcmp.eq.s32.totalorder %v2034, 1
      %vm2043 = vcmp.eq.s32.totalorder %v2035, 1
      %vm2044 = vcmp.eq.s32.totalorder %v2036, 1
      %vm2045 = vcmp.eq.s32.totalorder %v2037, 1
      %vm2046 = vcmp.eq.s32.totalorder %v2038, 1
      %vm2047 = vcmp.eq.s32.totalorder %v2039, 1
      %vm2048 = vcmp.eq.s32.totalorder %v2040, 1
      %vm2049 = vcmp.eq.s32.totalorder %v2041, 1
      %v2050 = vsel %vm2042, %v208, %v456
      %v2051 = vsel %vm2042, %v209, %v560
      %v2052 = vsel %vm2043, %v217, %v664
      %v2053 = vsel %vm2043, %v218, %v768
      %v2054 = vsel %vm2044, %v223, %v872
      %v2055 = vsel %vm2044, %v224, %v976
      %v2056 = vsel %vm2045, %v208, %v1080
      %v2057 = vsel %vm2045, %v209, %v1184
      %v2058 = vsel %vm2046, %v217, %v1288
      %v2059 = vsel %vm2046, %v218, %v1392
      %v2060 = vsel %vm2047, %v223, %v1496
      %v2061 = vsel %vm2047, %v224, %v1600
      %v2062 = vsel %vm2048, %v208, %v1704
      %v2063 = vsel %vm2048, %v209, %v1808
      %v2064 = vsel %vm2049, %v217, %v1912
      %v2065 = vsel %vm2049, %v218, %v2016
      %2066 = vxpose.xlu0.b32.start [1/16] %v2050, 128
      %2067 = vxpose.xlu0.b32.cont [2/16] %v2052, 128
      %2068 = vxpose.xlu0.b32.cont [3/16] %v2054, 128
      %2069 = vxpose.xlu0.b32.cont [4/16] %v2056, 128
      %2070 = vxpose.xlu0.b32.cont [5/16] %v2058, 128
      %2071 = vxpose.xlu0.b32.cont [6/16] %v2060, 128
      %2072 = vxpose.xlu0.b32.cont [7/16] %v2062, 128
      %2073 = vxpose.xlu0.b32.cont [8/16] %v2064, 128
      %2074 = vxpose.xlu0.b32.cont [9/16] 0.0, 128
      %2075 = vxpose.xlu0.b32.cont [10/16] 0.0, 128
      %2076 = vxpose.xlu0.b32.cont [11/16] 0.0, 128
      %2077 = vxpose.xlu0.b32.cont [12/16] 0.0, 128
      %2078 = vxpose.xlu0.b32.cont [13/16] 0.0, 128
      %2079 = vxpose.xlu0.b32.cont [14/16] 0.0, 128
      %2080 = vxpose.xlu0.b32.cont [15/16] 0.0, 128
      %2081 = vxpose.xlu0.b32.end [16/16] 0.0, 128
      %v2082 = vpop.trf.xlu0
      %v2083 = vpop.trf.xlu0
      %v2084 = vpop.trf.xlu0
      %v2085 = vpop.trf.xlu0
      %v2086 = vpop.trf.xlu0
      %v2087 = vpop.trf.xlu0
      %v2088 = vpop.trf.xlu0
      %v2089 = vpop.trf.xlu0
      %v2090 = vpop.trf.xlu0
      %v2091 = vpop.trf.xlu0
      %v2092 = vpop.trf.xlu0
      %v2093 = vpop.trf.xlu0
      %v2094 = vpop.trf.xlu0
      %v2095 = vpop.trf.xlu0
      %v2096 = vpop.trf.xlu0
      %v2097 = vpop.trf.xlu0
      %2098 = vxpose.xlu0.b32.start [1/16] %v2051, 128
      %2099 = vxpose.xlu0.b32.cont [2/16] %v2053, 128
      %2100 = vxpose.xlu0.b32.cont [3/16] %v2055, 128
      %2101 = vxpose.xlu0.b32.cont [4/16] %v2057, 128
      %2102 = vxpose.xlu0.b32.cont [5/16] %v2059, 128
      %2103 = vxpose.xlu0.b32.cont [6/16] %v2061, 128
      %2104 = vxpose.xlu0.b32.cont [7/16] %v2063, 128
      %2105 = vxpose.xlu0.b32.cont [8/16] %v2065, 128
      %2106 = vxpose.xlu0.b32.cont [9/16] 0.0, 128
      %2107 = vxpose.xlu0.b32.cont [10/16] 0.0, 128
      %2108 = vxpose.xlu0.b32.cont [11/16] 0.0, 128
      %2109 = vxpose.xlu0.b32.cont [12/16] 0.0, 128
      %2110 = vxpose.xlu0.b32.cont [13/16] 0.0, 128
      %2111 = vxpose.xlu0.b32.cont [14/16] 0.0, 128
      %2112 = vxpose.xlu0.b32.cont [15/16] 0.0, 128
      %2113 = vxpose.xlu0.b32.end [16/16] 0.0, 128
      %v2114 = vpop.trf.xlu0
      %v2115 = vpop.trf.xlu0
      %v2116 = vpop.trf.xlu0
      %v2117 = vpop.trf.xlu0
      %v2118 = vpop.trf.xlu0
      %v2119 = vpop.trf.xlu0
      %v2120 = vpop.trf.xlu0
      %v2121 = vpop.trf.xlu0
      %v2122 = vpop.trf.xlu0
      %v2123 = vpop.trf.xlu0
      %v2124 = vpop.trf.xlu0
      %v2125 = vpop.trf.xlu0
      %v2126 = vpop.trf.xlu0
      %v2127 = vpop.trf.xlu0
      %v2128 = vpop.trf.xlu0
      %v2129 = vpop.trf.xlu0
      %vm2130 = vcmask 515072
      %2131 = vst.msk [vmem:[%s172] sm:$0xff] %vm2130, %v2082
      %2132 = vst.msk [vmem:[%s172 + $0x8] sm:$0xff] %vm2130, %v2083
      %2133 = vst.msk [vmem:[%s172 + $0x10] sm:$0xff] %vm2130, %v2084
      %2134 = vst.msk [vmem:[%s172 + $0x18] sm:$0xff] %vm2130, %v2085
      %2135 = vst.msk [vmem:[%s172 + $0x20] sm:$0xff] %vm2130, %v2086
      %2136 = vst.msk [vmem:[%s172 + $0x28] sm:$0xff] %vm2130, %v2087
      %2137 = vst.msk [vmem:[%s172 + $0x30] sm:$0xff] %vm2130, %v2088
      %2138 = vst.msk [vmem:[%s172 + $0x38] sm:$0xff] %vm2130, %v2089
      %2139 = vst.msk [vmem:[%s172 + $0x40] sm:$0xff] %vm2130, %v2090
      %2140 = vst.msk [vmem:[%s172 + $0x48] sm:$0xff] %vm2130, %v2091
      %2141 = vst.msk [vmem:[%s172 + $0x50] sm:$0xff] %vm2130, %v2092
      %2142 = vst.msk [vmem:[%s172 + $0x58] sm:$0xff] %vm2130, %v2093
      %2143 = vst.msk [vmem:[%s172 + $0x60] sm:$0xff] %vm2130, %v2094
      %2144 = vst.msk [vmem:[%s172 + $0x68] sm:$0xff] %vm2130, %v2095
      %2145 = vst.msk [vmem:[%s172 + $0x70] sm:$0xff] %vm2130, %v2096
      %2146 = vst.msk [vmem:[%s172 + $0x78] sm:$0xff] %vm2130, %v2097
      %2147 = vst.msk [vmem:[%s172 + $0x80] sm:$0xff] %vm2130, %v2114
      %2148 = vst.msk [vmem:[%s172 + $0x88] sm:$0xff] %vm2130, %v2115
      %2149 = vst.msk [vmem:[%s172 + $0x90] sm:$0xff] %vm2130, %v2116
      %2150 = vst.msk [vmem:[%s172 + $0x98] sm:$0xff] %vm2130, %v2117
      %2151 = vst.msk [vmem:[%s172 + $0xa0] sm:$0xff] %vm2130, %v2118
      %2152 = vst.msk [vmem:[%s172 + $0xa8] sm:$0xff] %vm2130, %v2119
      %2153 = vst.msk [vmem:[%s172 + $0xb0] sm:$0xff] %vm2130, %v2120
      %2154 = vst.msk [vmem:[%s172 + $0xb8] sm:$0xff] %vm2130, %v2121
      %2155 = vst.msk [vmem:[%s172 + $0xc0] sm:$0xff] %vm2130, %v2122
      %2156 = vst.msk [vmem:[%s172 + $0xc8] sm:$0xff] %vm2130, %v2123
      %2157 = vst.msk [vmem:[%s172 + $0xd0] sm:$0xff] %vm2130, %v2124
      %2158 = vst.msk [vmem:[%s172 + $0xd8] sm:$0xff] %vm2130, %v2125
      %2159 = vst.msk [vmem:[%s172 + $0xe0] sm:$0xff] %vm2130, %v2126
      %2160 = vst.msk [vmem:[%s172 + $0xe8] sm:$0xff] %vm2130, %v2127
      %2161 = vst.msk [vmem:[%s172 + $0xf0] sm:$0xff] %vm2130, %v2128
      %2162 = vst.msk [vmem:[%s172 + $0xf8] sm:$0xff] %vm2130, %v2129
      %s2163 = smul.u32 32, %s14
      %p2164 = scmp.lt.s32.totalorder %s2163, 63
      %s2165 = scalar_select %p2164, %s2163, 63
      %s2166 = smul.addr %s2165, 8
      %s2167 = scalar_lea.vmem %s3, %s2166
      // Predicated region
      $region33: #{tpu_custom_call.1} parent=31 // pred_check
        %p2168 = pneg %p100
      $region34: #{tpu_custom_call.1} parent=31 // pred_check_branch
        %2170 = sbr.rel (%p2168) target = $region36
      $region35: #{tpu_custom_call.1} parent=31 // pred_region
        %s2171 = smul.u32 32, %s14
      $region36: #{tpu_custom_call.1} parent=31 // pred_fallthru
        _
    $region32: #{tpu_custom_call.1} parent=5 // pred_fallthru
      _
    %p2172 = scmp.le.s32.totalorder 2, %s9
    // Predicated region
    $region37: #{tpu_custom_call.1} parent=5 // pred_check
      %p2173 = pneg %p2172
    $region38: #{tpu_custom_call.1} parent=5 // pred_check_branch
      %2175 = sbr.rel (%p2173) target = $region40
    $region39: #{tpu_custom_call.1} parent=5 // pred_region
      %s2176 = ssub.s32 %s9, 2
      // Predicated region
      $region41: #{tpu_custom_call.1} parent=39 // pred_check
        %p2177 = pneg %p106
      $region42: #{tpu_custom_call.1} parent=39 // pred_check_branch
        %2179 = sbr.rel (%p2177) target = $region44
      $region43: #{tpu_custom_call.1} parent=39 // pred_region
        %s2180 = smul.u32 32, %s15
        %p2181 = scmp.lt.s32.totalorder %s2180, 63
        %s2182 = scalar_select %p2181, %s2180, 63
        %s2183 = smul.addr %s2182, 8
        %s2184 = scalar_lea.vmem %s3, %s2183
      $region44: #{tpu_custom_call.1} parent=39 // pred_fallthru
        _
    $region40: #{tpu_custom_call.1} parent=5 // pred_fallthru
      _
  $region6: #{tpu_custom_call.1} parent=0 // loop_footer
    %s13 = sadd.s32 1, %s9
  $region7: #{tpu_custom_call.1} parent=0 // loop_footer_branch
    %8 = sbr.rel target = $region3
  $region8: #{tpu_custom_call.1} parent=0 // loop_exit
    _

</llo_original>
